<compile_context>
chip_gen: v6e
topology: v6e:2x2x1
jax: 0.10.0
libtpu: 0.0.40
codegen_flags: <defaults>
</compile_context>

<pallas_src>
import jax
import jax.numpy as jnp
from jax.experimental import pallas as pl
from jax.experimental.pallas import tpu as pltpu


# ----------------------------- Pallas kernel --------------------------------
def voxel_mlp_kernel(x_ref,
                     w0_ref, b0_ref,
                     w1_ref, b1_ref,
                     w2_ref, b2_ref,
                     w3_ref, b3_ref,
                     woccT_ref, bocc_ref,
                     out_ref):
    # x_ref: (1, C, TILE_V); weights (Dout, Din) bf16; biases (Dout, 1) f32;
    # woccT (D, 1) f32; bocc (1, 1) f32; out (1, TILE_V) f32.
    x = x_ref[0].astype(jnp.bfloat16)                       # (C, TILE_V) (no-op if already bf16)

    # mlp[0]: Conv3d(C, D, 1) + ReLU.  f32 MXU accumulation, f32 bias/ReLU,
    # cast to bf16 right away so only the bf16 activation stays live.
    h = jnp.dot(w0_ref[...], x, preferred_element_type=jnp.float32)
    h = jnp.maximum(h + b0_ref[...], 0.0).astype(jnp.bfloat16)

    # Hidden layers 1 and 2 (of num_mlp_layers = 3): same pattern.
    for w_ref, b_ref in ((w1_ref, b1_ref), (w2_ref, b2_ref)):
        h = jnp.dot(w_ref[...], h, preferred_element_type=jnp.float32)
        h = jnp.maximum(h + b_ref[...], 0.0).astype(jnp.bfloat16)

    # Hidden layer 3: keep the f32 result — it feeds the VPU occ head next.
    h = jnp.dot(w3_ref[...], h, preferred_element_type=jnp.float32)
    h = jnp.maximum(h + b3_ref[...], 0.0)                   # f32 (D, TILE_V)

    # occ_predictor: Conv3d(D, 1, 1).  Single output row -> do it on the
    # VPU/XLU (broadcast-multiply + sublane reduce) instead of a one-row MXU
    # push/drain.
    occ = jnp.sum(woccT_ref[...] * h, axis=0, keepdims=True) + bocc_ref[...]
    out_ref[...] = occ.astype(out_ref.dtype)                # lane-dense (1, TILE_V)


# ------------------------------ helpers --------------------------------------
def _round_up(n, m):
    return ((n + m - 1) // m) * m


def _vmem_bytes(tile, C, D, in_itemsize):
    """Rough per-step VMEM footprint for a given voxel tile (bytes)."""
    return (2 * C * tile * in_itemsize        # input tile, double buffered
            + C * tile * 2                    # bf16 copy of the input tile
            + 2 * tile * 4                    # output tile, double buffered
            + (C * D + 3 * D * D) * 2         # bf16 weights (single buffered)
            + (4 * D + D + 1) * 4             # f32 biases + woccT + bocc
            + D * tile * (4 + 2)              # f32 matmul result + bf16 copy
            + D * tile * 4)                   # occ-head broadcast temporary


def _vmem_budget():
    """~80% of physical VMEM (v5e/v6e: 128 MiB, v7x: 64 MiB)."""
    try:
        cap = pltpu.get_tpu_info().vmem_capacity_bytes
    except Exception:
        cap = 64 * 1024 * 1024                # conservative fallback (v7x-safe)
    return int(0.8 * cap)


def _pick_tile(V_pad, tile_target, BP, C, D, in_itemsize, budget):
    """Largest 128-multiple divisor of V_pad that is <= tile_target and fits
    the VMEM budget; nudged so BP * n_tiles is even when that is cheap."""
    cands = [t for t in range(128, V_pad + 1, 128) if V_pad % t == 0]
    fitting = [t for t in cands
               if t <= tile_target and _vmem_bytes(t, C, D, in_itemsize) <= budget]
    if not fitting:
        fitting = [128]
    tile = max(fitting)
    n_vb = V_pad // tile
    # v7x has 2 TensorCores: prefer an even parallel iteration count if we can
    # get it without shrinking the tile by more than 2x.
    if (BP * n_vb) % 2 == 1:
        even = [t for t in fitting if (V_pad // t) % 2 == 0 and 2 * t >= tile]
        if even:
            tile = max(even)
            n_vb = V_pad // tile
    return tile, n_vb


def prepare_params(params):
    """One-time dtype/layout conversion so the per-call wrapper does no extra
    HBM passes: bf16 matmul weights, f32 biases, occ weight as an (D, 1)
    f32 column for the VPU occ head."""
    D = params["w1"].shape[0]
    return dict(
        w0=params["w0"].astype(jnp.bfloat16), b0=params["b0"].astype(jnp.float32),
        w1=params["w1"].astype(jnp.bfloat16), b1=params["b1"].astype(jnp.float32),
        w2=params["w2"].astype(jnp.bfloat16), b2=params["b2"].astype(jnp.float32),
        w3=params["w3"].astype(jnp.bfloat16), b3=params["b3"].astype(jnp.float32),
        woccT=params["wocc"].astype(jnp.float32).reshape(D, 1),
        bocc=params["bocc"].astype(jnp.float32).reshape(1, 1),
    )


def _const_spec(shape):
    """Whole small parameter tensor, resident in VMEM across the grid.
    Single-buffered: its index_map is constant, double-buffering buys nothing."""
    try:
        return pl.BlockSpec(shape, lambda i, j: (0, 0),
                            pipeline_mode=pl.Buffered(1))
    except TypeError:  # older BlockSpec without pipeline_mode
        return pl.BlockSpec(shape, lambda i, j: (0, 0))


# ------------------------------ wrapper --------------------------------------
def voxel_based_network(x, prepared, *, tile_v=2048):
    """x: (B, P, C, X, Y, Z) float32 (or bfloat16).
    prepared: output of prepare_params().  Returns (B, P, X, Y, Z) float32."""
    B, P, C, X, Y, Z = x.shape
    BP, V = B * P, X * Y * Z
    D = prepared["w1"].shape[0]

    # Pad the voxel axis only to a 128-lane multiple (no-op for typical grids),
    # then tile with a divisor of the padded length (no ragged blocks).
    V_pad = _round_up(V, 128)
    budget = _vmem_budget()
    tile_target = min(_round_up(tile_v, 128), V_pad)
    tile, n_vb = _pick_tile(V_pad, tile_target, BP, C, D,
                            x.dtype.itemsize, budget)

    # Pure reshape (no transpose): channels as rows, voxels on the lane axis.
    x3 = x.reshape(BP, C, V)
    if V_pad != V:
        x3 = jnp.pad(x3, ((0, 0), (0, 0), (0, V_pad - V)))

    weight_args = (
        prepared["w0"], prepared["b0"],
        prepared["w1"], prepared["b1"],
        prepared["w2"], prepared["b2"],
        prepared["w3"], prepared["b3"],
        prepared["woccT"], prepared["bocc"],
    )

    in_specs = [pl.BlockSpec((1, C, tile), lambda i, j: (i, 0, j))]
    in_specs += [_const_spec(a.shape) for a in weight_args]
    # Lane-dense output: one (1, TILE_V) row per grid step, unique block per step.
    out_spec = pl.BlockSpec((1, tile), lambda i, j: (0, i * n_vb + j))

    est = _vmem_bytes(tile, C, D, x3.dtype.itemsize)
    vmem_limit = min(budget, max(2 * est, 32 * 1024 * 1024))

    out_flat = pl.pallas_call(
        voxel_mlp_kernel,
        out_shape=jax.ShapeDtypeStruct((1, BP * V_pad), jnp.float32),
        grid_spec=pltpu.PrefetchScalarGridSpec(
            num_scalar_prefetch=0,
            grid=(BP, n_vb),
            in_specs=in_specs,
            out_specs=out_spec,
        ),
        compiler_params=pltpu.CompilerParams(
            dimension_semantics=("parallel", "parallel"),
            vmem_limit_bytes=vmem_limit),
    )(x3, *weight_args)

    out = out_flat.reshape(BP, V_pad)
    if V_pad != V:
        out = out[:, :V]
    return out.reshape(B, P, X, Y, Z)


# ------------------------- deterministic parameter init ----------------------
def init_params(key, in_channels, dim_mlp):
    ks = jax.random.split(key, 10)

    def conv1(kw, kb, fan_in, fan_out):
        s = 1.0 / jnp.sqrt(jnp.float32(fan_in))
        w = jax.random.uniform(kw, (fan_out, fan_in), jnp.float32, -s, s)
        b = jax.random.uniform(kb, (fan_out, 1), jnp.float32, -s, s)
        return w, b

    w0, b0 = conv1(ks[0], ks[1], in_channels, dim_mlp)
    w1, b1 = conv1(ks[2], ks[3], dim_mlp, dim_mlp)
    w2, b2 = conv1(ks[4], ks[5], dim_mlp, dim_mlp)
    w3, b3 = conv1(ks[6], ks[7], dim_mlp, dim_mlp)
    wocc, bocc = conv1(ks[8], ks[9], dim_mlp, 1)
    return dict(w0=w0, b0=b0, w1=w1, b1=b1, w2=w2, b2=b2, w3=w3, b3=b3,
                wocc=wocc, bocc=bocc)


# ----------------------------- pure-JAX reference (f32) ----------------------
def reference(x, params):
    B, P, C, X, Y, Z = x.shape
    t = x.reshape(B * P, C, X * Y * Z).astype(jnp.float32)
    h = jnp.maximum(jnp.einsum('oc,bcv->bov', params["w0"], t)
                    + params["b0"][None], 0.0)
    for w, b in ((params["w1"], params["b1"]),
                 (params["w2"], params["b2"]),
                 (params["w3"], params["b3"])):
        h = jnp.maximum(jnp.einsum('oc,bcv->bov', w, h) + b[None], 0.0)
    occ = jnp.einsum('oc,bcv->bov', params["wocc"], h) + params["bocc"][None]
    return occ.reshape(B, P, X, Y, Z)


if __name__ == "__main__":
    # Small synthetic config: in_channels=32, dim_mlp=64, num_mlp_layers=3
    # (same structure as VoxelBasedNetwork, scaled-down dims).
    B, P, C, X, Y, Z = 2, 2, 32, 8, 8, 8          # B*P = 4 items, 512 voxels each
    D_MLP = 64

    key = jax.random.PRNGKey(0)
    k_x, k_p = jax.random.split(key)
    x = jax.random.normal(k_x, (B, P, C, X, Y, Z), jnp.float32)
    params = init_params(k_p, C, D_MLP)
    prepared = prepare_params(params)             # one-time dtype/layout conversion

    out = jax.block_until_ready(voxel_based_network(x, prepared, tile_v=2048))
    ref = reference(x, params)

    assert out.shape == (B, P, X, Y, Z)
    # bf16 matmul operands with f32 accumulation: loosened tolerance vs f32 ref.
    max_err = float(jnp.max(jnp.abs(out - ref)))
    assert jnp.allclose(out, ref, atol=5e-2, rtol=5e-2), f"mismatch: {max_err}"

    print("KERNEL_OK")
</pallas_src>

<mosaic_0001>
module attributes {stable_mosaic.version = 11 : i64} {
  func.func @voxel_mlp_kernel(%arg0: i32, %arg1: i32, %arg2: memref<1x32x512xf32, #tpu.memory_space<vmem>>, %arg3: memref<64x32xbf16, #tpu.memory_space<vmem>>, %arg4: memref<64x1xf32, #tpu.memory_space<vmem>>, %arg5: memref<64x64xbf16, #tpu.memory_space<vmem>>, %arg6: memref<64x1xf32, #tpu.memory_space<vmem>>, %arg7: memref<64x64xbf16, #tpu.memory_space<vmem>>, %arg8: memref<64x1xf32, #tpu.memory_space<vmem>>, %arg9: memref<64x64xbf16, #tpu.memory_space<vmem>>, %arg10: memref<64x1xf32, #tpu.memory_space<vmem>>, %arg11: memref<64x1xf32, #tpu.memory_space<vmem>>, %arg12: memref<1x1xf32, #tpu.memory_space<vmem>>, %arg13: memref<1x512xf32, #tpu.memory_space<vmem>>) attributes {dimension_semantics = [#tpu.dimension_semantics<parallel>, #tpu.dimension_semantics<parallel>], iteration_bounds = array<i64: 4, 1>, scalar_prefetch = 0 : i64, scratch_operands = 0 : i64, tpu.core_type = #tpu.core_type<tc>, window_params = [{transform_indices = @transform_0, window_bounds = array<i64: 1, 32, 512>}, {pipeline_mode = #tpu.pipeline_mode<synchronous>, transform_indices = @transform_1, window_bounds = array<i64: 64, 32>}, {pipeline_mode = #tpu.pipeline_mode<synchronous>, transform_indices = @transform_2, window_bounds = array<i64: 64, 1>}, {pipeline_mode = #tpu.pipeline_mode<synchronous>, transform_indices = @transform_3, window_bounds = array<i64: 64, 64>}, {pipeline_mode = #tpu.pipeline_mode<synchronous>, transform_indices = @transform_4, window_bounds = array<i64: 64, 1>}, {pipeline_mode = #tpu.pipeline_mode<synchronous>, transform_indices = @transform_5, window_bounds = array<i64: 64, 64>}, {pipeline_mode = #tpu.pipeline_mode<synchronous>, transform_indices = @transform_6, window_bounds = array<i64: 64, 1>}, {pipeline_mode = #tpu.pipeline_mode<synchronous>, transform_indices = @transform_7, window_bounds = array<i64: 64, 64>}, {pipeline_mode = #tpu.pipeline_mode<synchronous>, transform_indices = @transform_8, window_bounds = array<i64: 64, 1>}, {pipeline_mode = #tpu.pipeline_mode<synchronous>, transform_indices = @transform_9, window_bounds = array<i64: 64, 1>}, {pipeline_mode = #tpu.pipeline_mode<synchronous>, transform_indices = @transform_10, window_bounds = array<i64: 1, 1>}, {transform_indices = @transform_11, window_bounds = array<i64: 1, 512>}]} {
    %c0 = arith.constant 0 : index
    %c0_0 = arith.constant 0 : index
    %c0_1 = arith.constant 0 : index
    %0 = vector.load %arg2[%c0, %c0_0, %c0_1] : memref<1x32x512xf32, #tpu.memory_space<vmem>>, vector<1x32x512xf32>
    %1 = vector.shape_cast %0 : vector<1x32x512xf32> to vector<32x512xf32>
    %2 = arith.truncf %1 : vector<32x512xf32> to vector<32x512xbf16>
    %c0_2 = arith.constant 0 : index
    %c0_3 = arith.constant 0 : index
    %3 = vector.load %arg3[%c0_2, %c0_3] : memref<64x32xbf16, #tpu.memory_space<vmem>>, vector<64x32xbf16>
    %cst = arith.constant dense<0.000000e+00> : vector<64x512xf32>
    %4 = tpu.matmul %3, %2, %cst {dimension_numbers = #tpu.dot_dimension_numbers<[1], [0], [0], [1], [0, 0, 1, 1], [], []>} : vector<64x32xbf16>, vector<32x512xbf16>, vector<64x512xf32> -> vector<64x512xf32>
    %c0_4 = arith.constant 0 : index
    %c0_5 = arith.constant 0 : index
    %5 = vector.load %arg4[%c0_4, %c0_5] : memref<64x1xf32, #tpu.memory_space<vmem>>, vector<64x1xf32>
    %6 = vector.broadcast %5 : vector<64x1xf32> to vector<64x512xf32>
    %7 = arith.addf %4, %6 : vector<64x512xf32>
    %cst_6 = arith.constant 0.000000e+00 : f32
    %8 = vector.broadcast %cst_6 : f32 to vector<64x512xf32>
    %9 = arith.maximumf %7, %8 : vector<64x512xf32>
    %10 = arith.truncf %9 : vector<64x512xf32> to vector<64x512xbf16>
    %c0_7 = arith.constant 0 : index
    %c0_8 = arith.constant 0 : index
    %11 = vector.load %arg5[%c0_7, %c0_8] : memref<64x64xbf16, #tpu.memory_space<vmem>>, vector<64x64xbf16>
    %cst_9 = arith.constant dense<0.000000e+00> : vector<64x512xf32>
    %12 = tpu.matmul %11, %10, %cst_9 {dimension_numbers = #tpu.dot_dimension_numbers<[1], [0], [0], [1], [0, 0, 1, 1], [], []>} : vector<64x64xbf16>, vector<64x512xbf16>, vector<64x512xf32> -> vector<64x512xf32>
    %c0_10 = arith.constant 0 : index
    %c0_11 = arith.constant 0 : index
    %13 = vector.load %arg6[%c0_10, %c0_11] : memref<64x1xf32, #tpu.memory_space<vmem>>, vector<64x1xf32>
    %14 = vector.broadcast %13 : vector<64x1xf32> to vector<64x512xf32>
    %15 = arith.addf %12, %14 : vector<64x512xf32>
    %cst_12 = arith.constant 0.000000e+00 : f32
    %16 = vector.broadcast %cst_12 : f32 to vector<64x512xf32>
    %17 = arith.maximumf %15, %16 : vector<64x512xf32>
    %18 = arith.truncf %17 : vector<64x512xf32> to vector<64x512xbf16>
    %c0_13 = arith.constant 0 : index
    %c0_14 = arith.constant 0 : index
    %19 = vector.load %arg7[%c0_13, %c0_14] : memref<64x64xbf16, #tpu.memory_space<vmem>>, vector<64x64xbf16>
    %cst_15 = arith.constant dense<0.000000e+00> : vector<64x512xf32>
    %20 = tpu.matmul %19, %18, %cst_15 {dimension_numbers = #tpu.dot_dimension_numbers<[1], [0], [0], [1], [0, 0, 1, 1], [], []>} : vector<64x64xbf16>, vector<64x512xbf16>, vector<64x512xf32> -> vector<64x512xf32>
    %c0_16 = arith.constant 0 : index
    %c0_17 = arith.constant 0 : index
    %21 = vector.load %arg8[%c0_16, %c0_17] : memref<64x1xf32, #tpu.memory_space<vmem>>, vector<64x1xf32>
    %22 = vector.broadcast %21 : vector<64x1xf32> to vector<64x512xf32>
    %23 = arith.addf %20, %22 : vector<64x512xf32>
    %cst_18 = arith.constant 0.000000e+00 : f32
    %24 = vector.broadcast %cst_18 : f32 to vector<64x512xf32>
    %25 = arith.maximumf %23, %24 : vector<64x512xf32>
    %26 = arith.truncf %25 : vector<64x512xf32> to vector<64x512xbf16>
    %c0_19 = arith.constant 0 : index
    %c0_20 = arith.constant 0 : index
    %27 = vector.load %arg9[%c0_19, %c0_20] : memref<64x64xbf16, #tpu.memory_space<vmem>>, vector<64x64xbf16>
    %cst_21 = arith.constant dense<0.000000e+00> : vector<64x512xf32>
    %28 = tpu.matmul %27, %26, %cst_21 {dimension_numbers = #tpu.dot_dimension_numbers<[1], [0], [0], [1], [0, 0, 1, 1], [], []>} : vector<64x64xbf16>, vector<64x512xbf16>, vector<64x512xf32> -> vector<64x512xf32>
    %c0_22 = arith.constant 0 : index
    %c0_23 = arith.constant 0 : index
    %29 = vector.load %arg10[%c0_22, %c0_23] : memref<64x1xf32, #tpu.memory_space<vmem>>, vector<64x1xf32>
    %30 = vector.broadcast %29 : vector<64x1xf32> to vector<64x512xf32>
    %31 = arith.addf %28, %30 : vector<64x512xf32>
    %cst_24 = arith.constant 0.000000e+00 : f32
    %32 = vector.broadcast %cst_24 : f32 to vector<64x512xf32>
    %33 = arith.maximumf %31, %32 : vector<64x512xf32>
    %c0_25 = arith.constant 0 : index
    %c0_26 = arith.constant 0 : index
    %34 = vector.load %arg11[%c0_25, %c0_26] : memref<64x1xf32, #tpu.memory_space<vmem>>, vector<64x1xf32>
    %35 = vector.broadcast %34 : vector<64x1xf32> to vector<64x512xf32>
    %36 = arith.mulf %35, %33 : vector<64x512xf32>
    %cst_27 = arith.constant dense<0.000000e+00> : vector<512xf32>
    %37 = vector.multi_reduction <add>, %36, %cst_27 [0] : vector<64x512xf32> to vector<512xf32>
    %38 = vector.shape_cast %37 : vector<512xf32> to vector<1x512xf32>
    %c0_28 = arith.constant 0 : index
    %c0_29 = arith.constant 0 : index
    %39 = vector.load %arg12[%c0_28, %c0_29] : memref<1x1xf32, #tpu.memory_space<vmem>>, vector<1x1xf32>
    %40 = vector.broadcast %39 : vector<1x1xf32> to vector<1x512xf32>
    %41 = arith.addf %38, %40 : vector<1x512xf32>
    %c0_30 = arith.constant 0 : index
    %c0_31 = arith.constant 0 : index
    %42 = vector.load %arg13[%c0_30, %c0_31] : memref<1x512xf32, #tpu.memory_space<vmem>>, vector<1x512xf32>
    tpu.vector_store %arg13[%c0_30, %c0_31], %41 {strides = array<i32>} : memref<1x512xf32, #tpu.memory_space<vmem>>, vector<1x512xf32>,
    return
  }
  func.func @transform_0(%arg0: i32, %arg1: i32) -> (i32, i32, i32) {
    %c0_i32 = arith.constant 0 : i32
    %c0_i32_0 = arith.constant 0 : i32
    return %arg0, %c0_i32, %arg1 : i32, i32, i32
  }
  func.func @transform_1(%arg0: i32, %arg1: i32) -> (i32, i32) {
    %c0_i32 = arith.constant 0 : i32
    %c0_i32_0 = arith.constant 0 : i32
    %c0_i32_1 = arith.constant 0 : i32
    return %c0_i32, %c0_i32_0 : i32, i32
  }
  func.func @transform_2(%arg0: i32, %arg1: i32) -> (i32, i32) {
    %c0_i32 = arith.constant 0 : i32
    %c0_i32_0 = arith.constant 0 : i32
    %c0_i32_1 = arith.constant 0 : i32
    return %c0_i32, %c0_i32_0 : i32, i32
  }
  func.func @transform_3(%arg0: i32, %arg1: i32) -> (i32, i32) {
    %c0_i32 = arith.constant 0 : i32
    %c0_i32_0 = arith.constant 0 : i32
    %c0_i32_1 = arith.constant 0 : i32
    return %c0_i32, %c0_i32_0 : i32, i32
  }
  func.func @transform_4(%arg0: i32, %arg1: i32) -> (i32, i32) {
    %c0_i32 = arith.constant 0 : i32
    %c0_i32_0 = arith.constant 0 : i32
    %c0_i32_1 = arith.constant 0 : i32
    return %c0_i32, %c0_i32_0 : i32, i32
  }
  func.func @transform_5(%arg0: i32, %arg1: i32) -> (i32, i32) {
    %c0_i32 = arith.constant 0 : i32
    %c0_i32_0 = arith.constant 0 : i32
    %c0_i32_1 = arith.constant 0 : i32
    return %c0_i32, %c0_i32_0 : i32, i32
  }
  func.func @transform_6(%arg0: i32, %arg1: i32) -> (i32, i32) {
    %c0_i32 = arith.constant 0 : i32
    %c0_i32_0 = arith.constant 0 : i32
    %c0_i32_1 = arith.constant 0 : i32
    return %c0_i32, %c0_i32_0 : i32, i32
  }
  func.func @transform_7(%arg0: i32, %arg1: i32) -> (i32, i32) {
    %c0_i32 = arith.constant 0 : i32
    %c0_i32_0 = arith.constant 0 : i32
    %c0_i32_1 = arith.constant 0 : i32
    return %c0_i32, %c0_i32_0 : i32, i32
  }
  func.func @transform_8(%arg0: i32, %arg1: i32) -> (i32, i32) {
    %c0_i32 = arith.constant 0 : i32
    %c0_i32_0 = arith.constant 0 : i32
    %c0_i32_1 = arith.constant 0 : i32
    return %c0_i32, %c0_i32_0 : i32, i32
  }
  func.func @transform_9(%arg0: i32, %arg1: i32) -> (i32, i32) {
    %c0_i32 = arith.constant 0 : i32
    %c0_i32_0 = arith.constant 0 : i32
    %c0_i32_1 = arith.constant 0 : i32
    return %c0_i32, %c0_i32_0 : i32, i32
  }
  func.func @transform_10(%arg0: i32, %arg1: i32) -> (i32, i32) {
    %c0_i32 = arith.constant 0 : i32
    %c0_i32_0 = arith.constant 0 : i32
    %c0_i32_1 = arith.constant 0 : i32
    return %c0_i32, %c0_i32_0 : i32, i32
  }
  func.func @transform_11(%arg0: i32, %arg1: i32) -> (i32, i32) {
    %c1_i32 = arith.constant 1 : i32
    %0 = arith.muli %arg0, %c1_i32 : i32
    %1 = arith.addi %0, %arg1 : i32
    %c0_i32 = arith.constant 0 : i32
    %c0_i32_0 = arith.constant 0 : i32
    return %c0_i32, %1 : i32, i32
  }
}

</mosaic_0001>

<llo_original>
// kernel: tpu_custom_call.1
$region0: #{tpu_custom_call.1}
  #allocation0 [shape = 'u32[]', space=smem, size = 0x4, offset = 0x4, fixed_abs, tag = 'smem constant byte address 0x4 - core index']
  #allocation1 [shape = 'u32[144,128]{1,0:T(1,128)}', space=vmem, size = 0x12000, scoped, tag = 'internal scratch']
  #allocation2 [shape = 'f32[1,1]{1,0:T(1,128)S(1)}', space=vmem, size = 0x200, scoped, tag = 'scoped memory for tpu_custom_call.1']
  %s0 = inlined_call_operand.hbm [shape: f32[4,32,512], index: 0, kind: input, shape index: {}]
  %s1 = inlined_call_operand.vmem [shape: bf16[64,32], index: 1, kind: input, shape index: {}]
  %s2 = inlined_call_operand.vmem [shape: f32[64,1], index: 2, kind: input, shape index: {}]
  %s3 = inlined_call_operand.vmem [shape: bf16[64,64], index: 3, kind: input, shape index: {}]
  %s4 = inlined_call_operand.vmem [shape: f32[64,1], index: 4, kind: input, shape index: {}]
  %s5 = inlined_call_operand.vmem [shape: bf16[64,64], index: 5, kind: input, shape index: {}]
  %s6 = inlined_call_operand.vmem [shape: f32[64,1], index: 6, kind: input, shape index: {}]
  %s7 = inlined_call_operand.vmem [shape: bf16[64,64], index: 7, kind: input, shape index: {}]
  %s8 = inlined_call_operand.vmem [shape: f32[64,1], index: 8, kind: input, shape index: {}]
  %s9 = inlined_call_operand.vmem [shape: f32[64,1], index: 9, kind: input, shape index: {}]
  %s10 = inlined_call_operand.<no memory space> [shape: f32[1,1], index: 10, kind: input, shape index: {}]
  %s11 = inlined_call_operand.hbm [shape: f32[1,2048], index: 11, kind: output, shape index: {}]
  %s12 = sld [smem:[#allocation0]]
  $region81: #{tpu_custom_call.1} parent=0
    _
  %s14 = ssub.s32 1, %s12
  %s15 = scalar_select 0, %s14, %s12
  %v16 = vstv %s10
  %17 = vst [vmem:[#allocation2] sm:$0x1] %v16
  $region1: #{tpu_custom_call.1} parent=0
    #allocation3 [shape = 'u8[131072]{0}', space=vmem, size = 0x20000, scoped, tag = 'input window, operand 0']
    #allocation4 [shape = 's32[2]{0}', space=sflag, size = 0x8, scoped, tag = 'scoped memory for tpu_custom_call.1']
    #allocation5 [shape = 's32[2]{0}', space=sflag, size = 0x8, scoped, tag = 'scoped memory for tpu_custom_call.1']
    #allocation6 [shape = 'u8[4096]{0}', space=vmem, size = 0x1000, scoped, tag = 'output window, operand 0']
    %18 = vsyncpa [#allocation4], 0
    %s19 = scalar_lea.sflag [#allocation4], 1
    %20 = vsyncpa %s19, 0
    %21 = vsyncpa [#allocation5], 0
    %s22 = scalar_lea.sflag [#allocation5], 1
    %23 = vsyncpa %s22, 0
    loop: start=0, step=1, limit=6
    $region2: #{tpu_custom_call.1} parent=1 // loop_pre_header
      _
    $region3: #{tpu_custom_call.1} parent=1 // loop_header
      %s25 = sphi 0, %s29
      %p26 = scmp.ge.s32.totalorder %s25, 6
      %s32 = sphi 0, %s44
      %s33 = sphi 0, %s40
      %s34 = sphi 0, %s32
      %s35 = sphi 0, %s33
      %s36 = sphi 0, %s34
      %s37 = sphi 0, %s35
      %s49 = sphi 0, %s51
      %s52 = sphi 0, %s49
      %s53 = sphi 0, %s52
      %s69 = sphi 0, %s53
      %s73 = sphi 0, %s73
      %s75 = sphi 0, %s73
      %s76 = sphi 0, %s75
      %s90 = sphi 0, %s76
      %s94 = sphi 0, %s94
      %s96 = sphi 0, %s94
      %s97 = sphi 0, %s96
      %s111 = sphi 0, %s97
      %s115 = sphi 0, %s115
      %s117 = sphi 0, %s115
      %s118 = sphi 0, %s117
      %s132 = sphi 0, %s118
      %s136 = sphi 0, %s136
      %s138 = sphi 0, %s136
      %s139 = sphi 0, %s138
      %s153 = sphi 0, %s139
      %s157 = sphi 0, %s157
      %s159 = sphi 0, %s157
      %s160 = sphi 0, %s159
      %s174 = sphi 0, %s160
      %s178 = sphi 0, %s178
      %s180 = sphi 0, %s178
      %s181 = sphi 0, %s180
      %s195 = sphi 0, %s181
      %s199 = sphi 0, %s199
      %s201 = sphi 0, %s199
      %s202 = sphi 0, %s201
      %s216 = sphi 0, %s202
      %s220 = sphi 0, %s220
      %s222 = sphi 0, %s220
      %s223 = sphi 0, %s222
      %s237 = sphi 0, %s223
      %s241 = sphi 0, %s241
      %s243 = sphi 0, %s241
      %s244 = sphi 0, %s243
      %s258 = sphi 0, %s244
      %s262 = sphi 0, %s262
      %s264 = sphi 0, %s262
      %s265 = sphi 0, %s264
      %s279 = sphi 0, %s265
      %s287 = sphi 0, %s289
      %s290 = sphi 0, %s287
      %s291 = sphi 0, %s290
      %s307 = sphi 0, %s291
    $region4: #{tpu_custom_call.1} parent=1 // loop_header_branch
      %28 = sbr.rel (%p26) target = $region8
    $region5: #{tpu_custom_call.1} parent=1 // loop_body
      %s30 = ssub.s32 %s25, 1
      %s31 = ssub.s32 %s25, 2
      %s38 = sadd.s32 1, %s33
      %p39 = scmp.ge.s32.totalorder %s38, 1
      %s40 = scalar_select %p39, 0, %s38
      %s41 = sadd.s32 1, %s32
      %s42 = scalar_select %p39, %s41, %s32
      %p43 = scmp.ge.s32.totalorder %s42, 4
      %s44 = scalar_select %p43, 0, %s42
      %s45 = ssub.s32 %s32, %s44
      %s46 = ssub.s32 %s33, %s40
      %s47 = sor.u32 %s45, %s46
      %p48 = scmp.eq.s32.totalorder %s47, 0
      %s50 = sadd.s32 %s49, 1
      %s51 = scalar_select %p48, %s49, %s50
      %p54 = pneg %p48
      %p55 = scmp.eq.s32.totalorder %s25, 3
      %p56 = por %p54, %p55
      %p57 = scmp.ne.s32.totalorder %s49, %s52
      %p58 = scmp.eq.s32.totalorder %s25, 0
      %p59 = por %p57, %p58
      %p60 = scmp.ne.s32.totalorder %s49, %s52
      %p61 = scmp.eq.s32.totalorder %s30, 3
      %p62 = por %p60, %p61
      %p63 = scmp.ne.s32.totalorder %s52, %s53
      %p64 = scmp.eq.s32.totalorder %s30, 0
      %p65 = por %p63, %p64
      %p66 = scmp.ne.s32.totalorder %s52, %s53
      %p67 = scmp.eq.s32.totalorder %s31, 3
      %p68 = por %p66, %p67
      %p70 = scmp.ne.s32.totalorder %s53, %s69
      %p71 = scmp.eq.s32.totalorder %s31, 0
      %p72 = por %p70, %p71
      %s74 = sadd.s32 %s73, 1
      %p77 = scmp.eq.s32.totalorder %s25, 3
      %p78 = scmp.ne.s32.totalorder %s73, %s75
      %p79 = scmp.eq.s32.totalorder %s25, 0
      %p80 = por %p78, %p79
      %p81 = scmp.ne.s32.totalorder %s73, %s75
      %p82 = scmp.eq.s32.totalorder %s30, 3
      %p83 = por %p81, %p82
      %p84 = scmp.ne.s32.totalorder %s75, %s76
      %p85 = scmp.eq.s32.totalorder %s30, 0
      %p86 = por %p84, %p85
      %p87 = scmp.ne.s32.totalorder %s75, %s76
      %p88 = scmp.eq.s32.totalorder %s31, 3
      %p89 = por %p87, %p88
      %p91 = scmp.ne.s32.totalorder %s76, %s90
      %p92 = scmp.eq.s32.totalorder %s31, 0
      %p93 = por %p91, %p92
      %s95 = sadd.s32 %s94, 1
      %p98 = scmp.eq.s32.totalorder %s25, 3
      %p99 = scmp.ne.s32.totalorder %s94, %s96
      %p100 = scmp.eq.s32.totalorder %s25, 0
      %p101 = por %p99, %p100
      %p102 = scmp.ne.s32.totalorder %s94, %s96
      %p103 = scmp.eq.s32.totalorder %s30, 3
      %p104 = por %p102, %p103
      %p105 = scmp.ne.s32.totalorder %s96, %s97
      %p106 = scmp.eq.s32.totalorder %s30, 0
      %p107 = por %p105, %p106
      %p108 = scmp.ne.s32.totalorder %s96, %s97
      %p109 = scmp.eq.s32.totalorder %s31, 3
      %p110 = por %p108, %p109
      %p112 = scmp.ne.s32.totalorder %s97, %s111
      %p113 = scmp.eq.s32.totalorder %s31, 0
      %p114 = por %p112, %p113
      %s116 = sadd.s32 %s115, 1
      %p119 = scmp.eq.s32.totalorder %s25, 3
      %p120 = scmp.ne.s32.totalorder %s115, %s117
      %p121 = scmp.eq.s32.totalorder %s25, 0
      %p122 = por %p120, %p121
      %p123 = scmp.ne.s32.totalorder %s115, %s117
      %p124 = scmp.eq.s32.totalorder %s30, 3
      %p125 = por %p123, %p124
      %p126 = scmp.ne.s32.totalorder %s117, %s118
      %p127 = scmp.eq.s32.totalorder %s30, 0
      %p128 = por %p126, %p127
      %p129 = scmp.ne.s32.totalorder %s117, %s118
      %p130 = scmp.eq.s32.totalorder %s31, 3
      %p131 = por %p129, %p130
      %p133 = scmp.ne.s32.totalorder %s118, %s132
      %p134 = scmp.eq.s32.totalorder %s31, 0
      %p135 = por %p133, %p134
      %s137 = sadd.s32 %s136, 1
      %p140 = scmp.eq.s32.totalorder %s25, 3
      %p141 = scmp.ne.s32.totalorder %s136, %s138
      %p142 = scmp.eq.s32.totalorder %s25, 0
      %p143 = por %p141, %p142
      %p144 = scmp.ne.s32.totalorder %s136, %s138
      %p145 = scmp.eq.s32.totalorder %s30, 3
      %p146 = por %p144, %p145
      %p147 = scmp.ne.s32.totalorder %s138, %s139
      %p148 = scmp.eq.s32.totalorder %s30, 0
      %p149 = por %p147, %p148
      %p150 = scmp.ne.s32.totalorder %s138, %s139
      %p151 = scmp.eq.s32.totalorder %s31, 3
      %p152 = por %p150, %p151
      %p154 = scmp.ne.s32.totalorder %s139, %s153
      %p155 = scmp.eq.s32.totalorder %s31, 0
      %p156 = por %p154, %p155
      %s158 = sadd.s32 %s157, 1
      %p161 = scmp.eq.s32.totalorder %s25, 3
      %p162 = scmp.ne.s32.totalorder %s157, %s159
      %p163 = scmp.eq.s32.totalorder %s25, 0
      %p164 = por %p162, %p163
      %p165 = scmp.ne.s32.totalorder %s157, %s159
      %p166 = scmp.eq.s32.totalorder %s30, 3
      %p167 = por %p165, %p166
      %p168 = scmp.ne.s32.totalorder %s159, %s160
      %p169 = scmp.eq.s32.totalorder %s30, 0
      %p170 = por %p168, %p169
      %p171 = scmp.ne.s32.totalorder %s159, %s160
      %p172 = scmp.eq.s32.totalorder %s31, 3
      %p173 = por %p171, %p172
      %p175 = scmp.ne.s32.totalorder %s160, %s174
      %p176 = scmp.eq.s32.totalorder %s31, 0
      %p177 = por %p175, %p176
      %s179 = sadd.s32 %s178, 1
      %p182 = scmp.eq.s32.totalorder %s25, 3
      %p183 = scmp.ne.s32.totalorder %s178, %s180
      %p184 = scmp.eq.s32.totalorder %s25, 0
      %p185 = por %p183, %p184
      %p186 = scmp.ne.s32.totalorder %s178, %s180
      %p187 = scmp.eq.s32.totalorder %s30, 3
      %p188 = por %p186, %p187
      %p189 = scmp.ne.s32.totalorder %s180, %s181
      %p190 = scmp.eq.s32.totalorder %s30, 0
      %p191 = por %p189, %p190
      %p192 = scmp.ne.s32.totalorder %s180, %s181
      %p193 = scmp.eq.s32.totalorder %s31, 3
      %p194 = por %p192, %p193
      %p196 = scmp.ne.s32.totalorder %s181, %s195
      %p197 = scmp.eq.s32.totalorder %s31, 0
      %p198 = por %p196, %p197
      %s200 = sadd.s32 %s199, 1
      %p203 = scmp.eq.s32.totalorder %s25, 3
      %p204 = scmp.ne.s32.totalorder %s199, %s201
      %p205 = scmp.eq.s32.totalorder %s25, 0
      %p206 = por %p204, %p205
      %p207 = scmp.ne.s32.totalorder %s199, %s201
      %p208 = scmp.eq.s32.totalorder %s30, 3
      %p209 = por %p207, %p208
      %p210 = scmp.ne.s32.totalorder %s201, %s202
      %p211 = scmp.eq.s32.totalorder %s30, 0
      %p212 = por %p210, %p211
      %p213 = scmp.ne.s32.totalorder %s201, %s202
      %p214 = scmp.eq.s32.totalorder %s31, 3
      %p215 = por %p213, %p214
      %p217 = scmp.ne.s32.totalorder %s202, %s216
      %p218 = scmp.eq.s32.totalorder %s31, 0
      %p219 = por %p217, %p218
      %s221 = sadd.s32 %s220, 1
      %p224 = scmp.eq.s32.totalorder %s25, 3
      %p225 = scmp.ne.s32.totalorder %s220, %s222
      %p226 = scmp.eq.s32.totalorder %s25, 0
      %p227 = por %p225, %p226
      %p228 = scmp.ne.s32.totalorder %s220, %s222
      %p229 = scmp.eq.s32.totalorder %s30, 3
      %p230 = por %p228, %p229
      %p231 = scmp.ne.s32.totalorder %s222, %s223
      %p232 = scmp.eq.s32.totalorder %s30, 0
      %p233 = por %p231, %p232
      %p234 = scmp.ne.s32.totalorder %s222, %s223
      %p235 = scmp.eq.s32.totalorder %s31, 3
      %p236 = por %p234, %p235
      %p238 = scmp.ne.s32.totalorder %s223, %s237
      %p239 = scmp.eq.s32.totalorder %s31, 0
      %p240 = por %p238, %p239
      %s242 = sadd.s32 %s241, 1
      %p245 = scmp.eq.s32.totalorder %s25, 3
      %p246 = scmp.ne.s32.totalorder %s241, %s243
      %p247 = scmp.eq.s32.totalorder %s25, 0
      %p248 = por %p246, %p247
      %p249 = scmp.ne.s32.totalorder %s241, %s243
      %p250 = scmp.eq.s32.totalorder %s30, 3
      %p251 = por %p249, %p250
      %p252 = scmp.ne.s32.totalorder %s243, %s244
      %p253 = scmp.eq.s32.totalorder %s30, 0
      %p254 = por %p252, %p253
      %p255 = scmp.ne.s32.totalorder %s243, %s244
      %p256 = scmp.eq.s32.totalorder %s31, 3
      %p257 = por %p255, %p256
      %p259 = scmp.ne.s32.totalorder %s244, %s258
      %p260 = scmp.eq.s32.totalorder %s31, 0
      %p261 = por %p259, %p260
      %s263 = sadd.s32 %s262, 1
      %p266 = scmp.eq.s32.totalorder %s25, 3
      %p267 = scmp.ne.s32.totalorder %s262, %s264
      %p268 = scmp.eq.s32.totalorder %s25, 0
      %p269 = por %p267, %p268
      %p270 = scmp.ne.s32.totalorder %s262, %s264
      %p271 = scmp.eq.s32.totalorder %s30, 3
      %p272 = por %p270, %p271
      %p273 = scmp.ne.s32.totalorder %s264, %s265
      %p274 = scmp.eq.s32.totalorder %s30, 0
      %p275 = por %p273, %p274
      %p276 = scmp.ne.s32.totalorder %s264, %s265
      %p277 = scmp.eq.s32.totalorder %s31, 3
      %p278 = por %p276, %p277
      %p280 = scmp.ne.s32.totalorder %s265, %s279
      %p281 = scmp.eq.s32.totalorder %s31, 0
      %p282 = por %p280, %p281
      %s283 = sadd.s32 %s32, %s33
      %s284 = sadd.s32 %s44, %s40
      %s285 = ssub.s32 %s283, %s284
      %p286 = scmp.eq.s32.totalorder %s285, 0
      %s288 = sadd.s32 %s287, 1
      %s289 = scalar_select %p286, %s287, %s288
      %p292 = pneg %p286
      %p293 = scmp.eq.s32.totalorder %s25, 3
      %p294 = por %p292, %p293
      %p295 = scmp.ne.s32.totalorder %s287, %s290
      %p296 = scmp.eq.s32.totalorder %s25, 0
      %p297 = por %p295, %p296
      %p298 = scmp.ne.s32.totalorder %s287, %s290
      %p299 = scmp.eq.s32.totalorder %s30, 3
      %p300 = por %p298, %p299
      %p301 = scmp.ne.s32.totalorder %s290, %s291
      %p302 = scmp.eq.s32.totalorder %s30, 0
      %p303 = por %p301, %p302
      %p304 = scmp.ne.s32.totalorder %s290, %s291
      %p305 = scmp.eq.s32.totalorder %s31, 3
      %p306 = por %p304, %p305
      %p308 = scmp.ne.s32.totalorder %s291, %s307
      %p309 = scmp.eq.s32.totalorder %s31, 0
      %p310 = por %p308, %p309
      %p311 = scmp.le.s32.totalorder 1, %s25
      %p312 = scmp.lt.s32.totalorder %s25, 5
      %p313 = pnand %p311, %p312
      %p314 = pneg %p313
      // Predicated region
      $region9: #{tpu_custom_call.1} parent=5 // pred_check
        _
      $region10: #{tpu_custom_call.1} parent=5 // pred_check_branch
        %316 = sbr.rel (%p313) target = $region12
      $region11: #{tpu_custom_call.1} parent=5 // pred_region
        %s317 = ssub.s32 %s25, 1
        // Predicated region
        $region13: #{tpu_custom_call.1} parent=11 // pred_check
          %p318 = pneg %p86
        $region14: #{tpu_custom_call.1} parent=11 // pred_check_branch
          %320 = sbr.rel (%p318) target = $region16
        $region15: #{tpu_custom_call.1} parent=11 // pred_region
          _
        $region16: #{tpu_custom_call.1} parent=11 // pred_fallthru
          _
        // Predicated region
        $region17: #{tpu_custom_call.1} parent=11 // pred_check
          %p321 = pneg %p107
        $region18: #{tpu_custom_call.1} parent=11 // pred_check_branch
          %323 = sbr.rel (%p321) target = $region20
        $region19: #{tpu_custom_call.1} parent=11 // pred_region
          _
        $region20: #{tpu_custom_call.1} parent=11 // pred_fallthru
          _
        // Predicated region
        $region21: #{tpu_custom_call.1} parent=11 // pred_check
          %p324 = pneg %p128
        $region22: #{tpu_custom_call.1} parent=11 // pred_check_branch
          %326 = sbr.rel (%p324) target = $region24
        $region23: #{tpu_custom_call.1} parent=11 // pred_region
          _
        $region24: #{tpu_custom_call.1} parent=11 // pred_fallthru
          _
        // Predicated region
        $region25: #{tpu_custom_call.1} parent=11 // pred_check
          %p327 = pneg %p149
        $region26: #{tpu_custom_call.1} parent=11 // pred_check_branch
          %329 = sbr.rel (%p327) target = $region28
        $region27: #{tpu_custom_call.1} parent=11 // pred_region
          _
        $region28: #{tpu_custom_call.1} parent=11 // pred_fallthru
          _
        // Predicated region
        $region29: #{tpu_custom_call.1} parent=11 // pred_check
          %p330 = pneg %p170
        $region30: #{tpu_custom_call.1} parent=11 // pred_check_branch
          %332 = sbr.rel (%p330) target = $region32
        $region31: #{tpu_custom_call.1} parent=11 // pred_region
          _
        $region32: #{tpu_custom_call.1} parent=11 // pred_fallthru
          _
        // Predicated region
        $region33: #{tpu_custom_call.1} parent=11 // pred_check
          %p333 = pneg %p191
        $region34: #{tpu_custom_call.1} parent=11 // pred_check_branch
          %335 = sbr.rel (%p333) target = $region36
        $region35: #{tpu_custom_call.1} parent=11 // pred_region
          _
        $region36: #{tpu_custom_call.1} parent=11 // pred_fallthru
          _
        // Predicated region
        $region37: #{tpu_custom_call.1} parent=11 // pred_check
          %p336 = pneg %p212
        $region38: #{tpu_custom_call.1} parent=11 // pred_check_branch
          %338 = sbr.rel (%p336) target = $region40
        $region39: #{tpu_custom_call.1} parent=11 // pred_region
          _
        $region40: #{tpu_custom_call.1} parent=11 // pred_fallthru
          _
        // Predicated region
        $region41: #{tpu_custom_call.1} parent=11 // pred_check
          %p339 = pneg %p233
        $region42: #{tpu_custom_call.1} parent=11 // pred_check_branch
          %341 = sbr.rel (%p339) target = $region44
        $region43: #{tpu_custom_call.1} parent=11 // pred_region
          _
        $region44: #{tpu_custom_call.1} parent=11 // pred_fallthru
          _
        // Predicated region
        $region45: #{tpu_custom_call.1} parent=11 // pred_check
          %p342 = pneg %p254
        $region46: #{tpu_custom_call.1} parent=11 // pred_check_branch
          %344 = sbr.rel (%p342) target = $region48
        $region47: #{tpu_custom_call.1} parent=11 // pred_region
          _
        $region48: #{tpu_custom_call.1} parent=11 // pred_fallthru
          _
        // Predicated region
        $region49: #{tpu_custom_call.1} parent=11 // pred_check
          %p345 = pneg %p275
        $region50: #{tpu_custom_call.1} parent=11 // pred_check_branch
          %347 = sbr.rel (%p345) target = $region52
        $region51: #{tpu_custom_call.1} parent=11 // pred_region
          _
        $region52: #{tpu_custom_call.1} parent=11 // pred_fallthru
          _
      $region12: #{tpu_custom_call.1} parent=5 // pred_fallthru
        _
      %p348 = scmp.lt.s32.totalorder %s25, 4
      // Predicated region
      $region53: #{tpu_custom_call.1} parent=5 // pred_check
        %p349 = pneg %p348
      $region54: #{tpu_custom_call.1} parent=5 // pred_check_branch
        %351 = sbr.rel (%p349) target = $region56
      $region55: #{tpu_custom_call.1} parent=5 // pred_region
        // Predicated region
        $region57: #{tpu_custom_call.1} parent=55 // pred_check
          %p352 = pneg %p59
        $region58: #{tpu_custom_call.1} parent=55 // pred_check_branch
          %354 = sbr.rel (%p352) target = $region60
        $region59: #{tpu_custom_call.1} parent=55 // pred_region
          %s355 = sand.u32 %s49, 1
          %s356 = scalar_lea.sflag [#allocation4], %s355
          %s357 = sand.u32 %s49, 1
          %s358 = smul.addr %s357, 128
          %s359 = scalar_lea.vmem [#allocation3], %s358
          %s360 = smul.u32 4, %s33
          %s362 = ssub.s32 2048, 2048
          %363 = vsyncadd %s356, %s362
          %s364 = smul.addr %s32, 16
          %s365 = sadd.s32 %s360, %s364
          %s366 = smul.addr %s365, 128
          %s367 = scalar_lea.hbm %s0, %s366
          %s368 = sshll.u32 %s359, 4
          %s369 = int_to_ptr.vmem [resolvable:$true] %s368
          %374 = dma.hbm_to_vmem [thread:$0]  %s367, 2048, %s369, %s356, 512, 512, 32
        $region60: #{tpu_custom_call.1} parent=55 // pred_fallthru
          _
      $region56: #{tpu_custom_call.1} parent=5 // pred_fallthru
        _
      %p375 = scmp.le.s32.totalorder 1, %s25
      %p376 = scmp.lt.s32.totalorder %s25, 5
      %p377 = pnand %p375, %p376
      %p378 = pneg %p377
      // Predicated region
      $region61: #{tpu_custom_call.1} parent=5 // pred_check
        _
      $region62: #{tpu_custom_call.1} parent=5 // pred_check_branch
        %380 = sbr.rel (%p377) target = $region64
      $region63: #{tpu_custom_call.1} parent=5 // pred_region
        %s381 = ssub.s32 %s25, 1
        %s382 = sand.u32 %s52, 1
        %s383 = scalar_lea.sflag [#allocation4], %s382
        %s384 = sand.u32 %s52, 1
        %s385 = smul.addr %s384, 128
        %s386 = scalar_lea.vmem [#allocation3], %s385
        // Predicated region
        $region65: #{tpu_custom_call.1} parent=63 // pred_check
          %p387 = pneg %p65
        $region66: #{tpu_custom_call.1} parent=63 // pred_check_branch
          %389 = sbr.rel (%p387) target = $region68
        $region67: #{tpu_custom_call.1} parent=63 // pred_region
          %390 = dma.done %s383, 2048
        $region68: #{tpu_custom_call.1} parent=63 // pred_fallthru
          _
        %s391 = sand.u32 %s52, 1
        %s392 = scalar_lea.sflag [#allocation4], %s391
        %s393 = sand.u32 %s52, 1
        %s394 = smul.addr %s393, 128
        %s395 = scalar_lea.vmem [#allocation3], %s394
        %p396 = pneg %p65
        %p397 = pneg %p62
        %p398 = pneg %p86
        %p399 = pneg %p83
        %p400 = pneg %p107
        %p401 = pneg %p104
        %p402 = pneg %p128
        %p403 = pneg %p125
        %p404 = pneg %p149
        %p405 = pneg %p146
        %p406 = pneg %p170
        %p407 = pneg %p167
        %p408 = pneg %p191
        %p409 = pneg %p188
        %p410 = pneg %p212
        %p411 = pneg %p209
        %p412 = pneg %p233
        %p413 = pneg %p230
        %p414 = pneg %p254
        %p415 = pneg %p251
        %p416 = pneg %p275
        %p417 = pneg %p272
        %p418 = pneg %p303
        %p419 = pneg %p300
        %s420 = sand.u32 %s290, 1
        %s421 = scalar_lea.sflag [#allocation5], %s420
        %s422 = sand.u32 %s290, 1
        %s423 = smul.addr %s422, 4
        %s424 = scalar_lea.vmem [#allocation6], %s423
        %s425 = smul.u32 4, %s35
        %s426 = sadd.s32 %s34, %s35
        %s427 = smul.u32 4, %s426
        %v429 = vld [vmem:[%s386] sm:$0xff]
        %v430 = vld [vmem:[%s386 + $0x8] sm:$0xff]
        %v431 = vld [vmem:[%s386 + $0x10] sm:$0xff]
        %v432 = vld [vmem:[%s386 + $0x18] sm:$0xff]
        %v433 = vld [vmem:[%s386 + $0x20] sm:$0xff]
        %v434 = vld [vmem:[%s386 + $0x28] sm:$0xff]
        %v435 = vld [vmem:[%s386 + $0x30] sm:$0xff]
        %v436 = vld [vmem:[%s386 + $0x38] sm:$0xff]
        %v437 = vld [vmem:[%s386 + $0x40] sm:$0xff]
        %v438 = vld [vmem:[%s386 + $0x48] sm:$0xff]
        %v439 = vld [vmem:[%s386 + $0x50] sm:$0xff]
        %v440 = vld [vmem:[%s386 + $0x58] sm:$0xff]
        %v441 = vld [vmem:[%s386 + $0x60] sm:$0xff]
        %v442 = vld [vmem:[%s386 + $0x68] sm:$0xff]
        %v443 = vld [vmem:[%s386 + $0x70] sm:$0xff]
        %v444 = vld [vmem:[%s386 + $0x78] sm:$0xff]
        %v445 = vpack.c.bf16 %v433, %v429
        %v446 = vpack.c.bf16 %v434, %v430
        %v447 = vpack.c.bf16 %v435, %v431
        %v448 = vpack.c.bf16 %v436, %v432
        %v449 = vpack.c.bf16 %v441, %v437
        %v450 = vpack.c.bf16 %v442, %v438
        %v451 = vpack.c.bf16 %v443, %v439
        %v452 = vpack.c.bf16 %v444, %v440
        %v453 = vld [vmem:[%s1] sm:$0xf]
        %v454 = vld [vmem:[%s1 + $0x4] sm:$0xf]
        %v455 = vld [vmem:[%s1 + $0x8] sm:$0xf]
        %v456 = vld [vmem:[%s1 + $0xc] sm:$0xf]
        %v457 = vld [vmem:[%s1 + $0x10] sm:$0xf]
        %v458 = vld [vmem:[%s1 + $0x14] sm:$0xf]
        %v459 = vld [vmem:[%s1 + $0x18] sm:$0xf]
        %v460 = vld [vmem:[%s1 + $0x1c] sm:$0xf]
        %v461 = vld [vmem:[%s2] sm:$0xff]
        %v462 = vld [vmem:[%s2 + $0x8] sm:$0xff]
        %v463 = vld [vmem:[%s2 + $0x10] sm:$0xff]
        %v464 = vld [vmem:[%s2 + $0x18] sm:$0xff]
        %v465 = vld [vmem:[%s2 + $0x20] sm:$0xff]
        %v466 = vld [vmem:[%s2 + $0x28] sm:$0xff]
        %v467 = vld [vmem:[%s2 + $0x30] sm:$0xff]
        %v468 = vld [vmem:[%s2 + $0x38] sm:$0xff]
        %470 = vset.pattern.permute.xlu0 0
        %471 = vperm.xlu0 %470, %v461
        %v472 = vpop.permute.xlu0 %471
        %475 = vset.pattern.permute.xlu0 0
        %476 = vperm.xlu0 %475, %v462
        %v477 = vpop.permute.xlu0 %476
        %480 = vset.pattern.permute.xlu0 0
        %481 = vperm.xlu0 %480, %v463
        %v482 = vpop.permute.xlu0 %481
        %485 = vset.pattern.permute.xlu0 0
        %486 = vperm.xlu0 %485, %v464
        %v487 = vpop.permute.xlu0 %486
        %490 = vset.pattern.permute.xlu0 0
        %491 = vperm.xlu0 %490, %v465
        %v492 = vpop.permute.xlu0 %491
        %495 = vset.pattern.permute.xlu0 0
        %496 = vperm.xlu0 %495, %v466
        %v497 = vpop.permute.xlu0 %496
        %500 = vset.pattern.permute.xlu0 0
        %501 = vperm.xlu0 %500, %v467
        %v502 = vpop.permute.xlu0 %501
        %505 = vset.pattern.permute.xlu0 0
        %506 = vperm.xlu0 %505, %v468
        %v507 = vpop.permute.xlu0 %506
        %v517 = vunpack.c.l.b16 %v453
        %v518 = vunpack.c.l.b16 %v454
        %v519 = vunpack.c.l.b16 %v455
        %v520 = vunpack.c.l.b16 %v456
        %v521 = vunpack.c.l.b16 %v457
        %v522 = vunpack.c.l.b16 %v458
        %v523 = vunpack.c.l.b16 %v459
        %v524 = vunpack.c.l.b16 %v460
        %v525 = vpack.c.b16 %v518, %v517
        %v526 = vpack.c.b16 %v520, %v519
        %v527 = vpack.c.b16 %v522, %v521
        %v528 = vpack.c.b16 %v524, %v523
        %vm529 = vcmask 261120
        %v531 = vsel %vm529, %v525, 0
        %v534 = vsel %vm529, %v526, 0
        %v537 = vsel %vm529, %v527, 0
        %v540 = vsel %vm529, %v528, 0
        %542 = vmatprep.subr.bf16.mxu0 0
        %543 = vmatpush1.bf16.msra.mxu0 0
        %544 = vmatprep.subr.bf16.mxu0 0
        %545 = vmatpush1.bf16.msra.mxu0 0
        %546 = vmatprep.subr.bf16.mxu0 0
        %547 = vmatpush1.bf16.msra.mxu0 0
        %548 = vmatprep.subr.bf16.mxu0 0
        %549 = vmatpush1.bf16.msra.mxu0 0
        %550 = vmatprep.subr.bf16.mxu0 0
        %551 = vmatpush1.bf16.msra.mxu0 0
        %552 = vmatprep.subr.bf16.mxu0 0
        %553 = vmatpush1.bf16.msra.mxu0 0
        %554 = vmatprep.subr.bf16.mxu0 %v450
        %555 = vmatpush1.bf16.msra.mxu0 %v449
        %556 = vmatprep.subr.bf16.mxu0 %v446
        %557 = vmatpush1.bf16.msra.mxu0 %v445
        %558 = vmatprep.subr.bf16.mxu0 0
        %559 = vmatpush2.bf16.msra.mxu0 0
        %560 = vmatprep.subr.bf16.mxu0 0
        %561 = vmatpush2.bf16.msra.mxu0 0
        %562 = vmatprep.subr.bf16.mxu0 0
        %563 = vmatpush2.bf16.msra.mxu0 0
        %564 = vmatprep.subr.bf16.mxu0 0
        %565 = vmatpush2.bf16.msra.mxu0 0
        %566 = vmatprep.subr.bf16.mxu0 0
        %567 = vmatpush2.bf16.msra.mxu0 0
        %568 = vmatprep.subr.bf16.mxu0 0
        %569 = vmatpush2.bf16.msra.mxu0 0
        %570 = vmatprep.subr.bf16.mxu0 0
        %571 = vmatpush2.bf16.msra.mxu0 0
        %572 = vmatprep.subr.bf16.mxu0 0
        %573 = vmatpush2.bf16.msra.mxu0 0
        %574 = vmatprep.mubr.bf16.mxu0 0
        %575 = vmatmul.mubr.bf16.gmra.mxu0 %v531
        %v576 = vpop.f32.mrf.mxu0
        %v577 = vadd.f32 %v472, %v576
        %v578 = vpop.f32.mrf.mxu0
        %v579 = vadd.f32 %v472, %v578
        %v580 = vpop.f32.mrf.mxu0
        %v581 = vadd.f32 %v477, %v580
        %v582 = vpop.f32.mrf.mxu0
        %v583 = vadd.f32 %v477, %v582
        %584 = vmatprep.mubr.bf16.mxu0 0
        %585 = vmatmul.mubr.bf16.gmra.mxu0 %v534
        %v586 = vpop.f32.mrf.mxu0
        %v587 = vadd.f32 %v482, %v586
        %v588 = vpop.f32.mrf.mxu0
        %v589 = vadd.f32 %v482, %v588
        %v590 = vpop.f32.mrf.mxu0
        %v591 = vadd.f32 %v487, %v590
        %v592 = vpop.f32.mrf.mxu0
        %v593 = vadd.f32 %v487, %v592
        %594 = vmatprep.mubr.bf16.mxu0 0
        %595 = vmatmul.mubr.bf16.gmra.mxu0 %v537
        %v596 = vpop.f32.mrf.mxu0
        %v597 = vadd.f32 %v492, %v596
        %v598 = vpop.f32.mrf.mxu0
        %v599 = vadd.f32 %v492, %v598
        %v600 = vpop.f32.mrf.mxu0
        %v601 = vadd.f32 %v497, %v600
        %v602 = vpop.f32.mrf.mxu0
        %v603 = vadd.f32 %v497, %v602
        %604 = vmatprep.mubr.bf16.mxu0 0
        %605 = vmatmul.mubr.bf16.gmra.mxu0 %v540
        %v606 = vpop.f32.mrf.mxu0
        %v607 = vadd.f32 %v502, %v606
        %v608 = vpop.f32.mrf.mxu0
        %v609 = vadd.f32 %v502, %v608
        %v610 = vpop.f32.mrf.mxu0
        %v611 = vadd.f32 %v507, %v610
        %v612 = vpop.f32.mrf.mxu0
        %v613 = vadd.f32 %v507, %v612
        %614 = vdwg.mxu0
        %615 = vmatprep.subr.bf16.mxu0 0
        %616 = vmatpush1.bf16.msra.mxu0 0
        %617 = vmatprep.subr.bf16.mxu0 0
        %618 = vmatpush1.bf16.msra.mxu0 0
        %619 = vmatprep.subr.bf16.mxu0 0
        %620 = vmatpush1.bf16.msra.mxu0 0
        %621 = vmatprep.subr.bf16.mxu0 0
        %622 = vmatpush1.bf16.msra.mxu0 0
        %623 = vmatprep.subr.bf16.mxu0 0
        %624 = vmatpush1.bf16.msra.mxu0 0
        %625 = vmatprep.subr.bf16.mxu0 0
        %626 = vmatpush1.bf16.msra.mxu0 0
        %627 = vmatprep.subr.bf16.mxu0 %v452
        %628 = vmatpush1.bf16.msra.mxu0 %v451
        %629 = vmatprep.subr.bf16.mxu0 %v448
        %630 = vmatpush1.bf16.msra.mxu0 %v447
        %631 = vmatprep.subr.bf16.mxu0 0
        %632 = vmatpush2.bf16.msra.mxu0 0
        %633 = vmatprep.subr.bf16.mxu0 0
        %634 = vmatpush2.bf16.msra.mxu0 0
        %635 = vmatprep.subr.bf16.mxu0 0
        %636 = vmatpush2.bf16.msra.mxu0 0
        %637 = vmatprep.subr.bf16.mxu0 0
        %638 = vmatpush2.bf16.msra.mxu0 0
        %639 = vmatprep.subr.bf16.mxu0 0
        %640 = vmatpush2.bf16.msra.mxu0 0
        %641 = vmatprep.subr.bf16.mxu0 0
        %642 = vmatpush2.bf16.msra.mxu0 0
        %643 = vmatprep.subr.bf16.mxu0 0
        %644 = vmatpush2.bf16.msra.mxu0 0
        %645 = vmatprep.subr.bf16.mxu0 0
        %646 = vmatpush2.bf16.msra.mxu0 0
        %647 = vmatprep.mubr.bf16.mxu0 0
        %648 = vmatmul.mubr.bf16.gmra.mxu0 %v531
        %v649 = vpop.f32.mrf.mxu0
        %v650 = vadd.f32 %v472, %v649
        %v651 = vpop.f32.mrf.mxu0
        %v652 = vadd.f32 %v472, %v651
        %v653 = vpop.f32.mrf.mxu0
        %v654 = vadd.f32 %v477, %v653
        %v655 = vpop.f32.mrf.mxu0
        %v656 = vadd.f32 %v477, %v655
        %657 = vmatprep.mubr.bf16.mxu0 0
        %658 = vmatmul.mubr.bf16.gmra.mxu0 %v534
        %v659 = vpop.f32.mrf.mxu0
        %v660 = vadd.f32 %v482, %v659
        %v661 = vpop.f32.mrf.mxu0
        %v662 = vadd.f32 %v482, %v661
        %v663 = vpop.f32.mrf.mxu0
        %v664 = vadd.f32 %v487, %v663
        %v665 = vpop.f32.mrf.mxu0
        %v666 = vadd.f32 %v487, %v665
        %667 = vmatprep.mubr.bf16.mxu0 0
        %668 = vmatmul.mubr.bf16.gmra.mxu0 %v537
        %v669 = vpop.f32.mrf.mxu0
        %v670 = vadd.f32 %v492, %v669
        %v671 = vpop.f32.mrf.mxu0
        %v672 = vadd.f32 %v492, %v671
        %v673 = vpop.f32.mrf.mxu0
        %v674 = vadd.f32 %v497, %v673
        %v675 = vpop.f32.mrf.mxu0
        %v676 = vadd.f32 %v497, %v675
        %677 = vmatprep.mubr.bf16.mxu0 0
        %678 = vmatmul.mubr.bf16.gmra.mxu0 %v540
        %v679 = vpop.f32.mrf.mxu0
        %v680 = vadd.f32 %v502, %v679
        %v681 = vpop.f32.mrf.mxu0
        %v682 = vadd.f32 %v502, %v681
        %v683 = vpop.f32.mrf.mxu0
        %v684 = vadd.f32 %v507, %v683
        %v685 = vpop.f32.mrf.mxu0
        %v686 = vadd.f32 %v507, %v685
        %687 = vdwg.mxu0
        %v688 = vmax.f32 %v577, 0.0
        %v689 = vmax.f32 %v579, 0.0
        %v690 = vmax.f32 %v650, 0.0
        %v691 = vmax.f32 %v652, 0.0
        %v692 = vmax.f32 %v581, 0.0
        %v693 = vmax.f32 %v583, 0.0
        %v694 = vmax.f32 %v654, 0.0
        %v695 = vmax.f32 %v656, 0.0
        %v696 = vmax.f32 %v587, 0.0
        %v697 = vmax.f32 %v589, 0.0
        %v698 = vmax.f32 %v660, 0.0
        %v699 = vmax.f32 %v662, 0.0
        %v700 = vmax.f32 %v591, 0.0
        %v701 = vmax.f32 %v593, 0.0
        %v702 = vmax.f32 %v664, 0.0
        %v703 = vmax.f32 %v666, 0.0
        %v704 = vmax.f32 %v597, 0.0
        %v705 = vmax.f32 %v599, 0.0
        %v706 = vmax.f32 %v670, 0.0
        %v707 = vmax.f32 %v672, 0.0
        %v708 = vmax.f32 %v601, 0.0
        %v709 = vmax.f32 %v603, 0.0
        %v710 = vmax.f32 %v674, 0.0
        %v711 = vmax.f32 %v676, 0.0
        %v712 = vmax.f32 %v607, 0.0
        %v713 = vmax.f32 %v609, 0.0
        %v714 = vmax.f32 %v680, 0.0
        %v715 = vmax.f32 %v682, 0.0
        %v716 = vmax.f32 %v611, 0.0
        %v717 = vmax.f32 %v613, 0.0
        %v718 = vmax.f32 %v684, 0.0
        %v719 = vmax.f32 %v686, 0.0
        %v720 = vpack.c.bf16 %v692, %v688
        %v721 = vpack.c.bf16 %v693, %v689
        %v722 = vpack.c.bf16 %v694, %v690
        %v723 = vpack.c.bf16 %v695, %v691
        %v724 = vpack.c.bf16 %v700, %v696
        %v725 = vpack.c.bf16 %v701, %v697
        %v726 = vpack.c.bf16 %v702, %v698
        %v727 = vpack.c.bf16 %v703, %v699
        %v728 = vpack.c.bf16 %v708, %v704
        %v729 = vpack.c.bf16 %v709, %v705
        %v730 = vpack.c.bf16 %v710, %v706
        %v731 = vpack.c.bf16 %v711, %v707
        %v732 = vpack.c.bf16 %v716, %v712
        %v733 = vpack.c.bf16 %v717, %v713
        %v734 = vpack.c.bf16 %v718, %v714
        %v735 = vpack.c.bf16 %v719, %v715
        %v736 = vld [vmem:[%s3] sm:$0xf]
        %v737 = vld [vmem:[%s3 + $0x4] sm:$0xf]
        %v738 = vld [vmem:[%s3 + $0x8] sm:$0xf]
        %v739 = vld [vmem:[%s3 + $0xc] sm:$0xf]
        %v740 = vld [vmem:[%s3 + $0x10] sm:$0xf]
        %v741 = vld [vmem:[%s3 + $0x14] sm:$0xf]
        %v742 = vld [vmem:[%s3 + $0x18] sm:$0xf]
        %v743 = vld [vmem:[%s3 + $0x1c] sm:$0xf]
        %v744 = vld [vmem:[%s4] sm:$0xff]
        %v745 = vld [vmem:[%s4 + $0x8] sm:$0xff]
        %v746 = vld [vmem:[%s4 + $0x10] sm:$0xff]
        %v747 = vld [vmem:[%s4 + $0x18] sm:$0xff]
        %v748 = vld [vmem:[%s4 + $0x20] sm:$0xff]
        %v749 = vld [vmem:[%s4 + $0x28] sm:$0xff]
        %v750 = vld [vmem:[%s4 + $0x30] sm:$0xff]
        %v751 = vld [vmem:[%s4 + $0x38] sm:$0xff]
        %753 = vset.pattern.permute.xlu0 0
        %754 = vperm.xlu0 %753, %v744
        %v755 = vpop.permute.xlu0 %754
        %758 = vset.pattern.permute.xlu0 0
        %759 = vperm.xlu0 %758, %v745
        %v760 = vpop.permute.xlu0 %759
        %763 = vset.pattern.permute.xlu0 0
        %764 = vperm.xlu0 %763, %v746
        %v765 = vpop.permute.xlu0 %764
        %768 = vset.pattern.permute.xlu0 0
        %769 = vperm.xlu0 %768, %v747
        %v770 = vpop.permute.xlu0 %769
        %773 = vset.pattern.permute.xlu0 0
        %774 = vperm.xlu0 %773, %v748
        %v775 = vpop.permute.xlu0 %774
        %778 = vset.pattern.permute.xlu0 0
        %779 = vperm.xlu0 %778, %v749
        %v780 = vpop.permute.xlu0 %779
        %783 = vset.pattern.permute.xlu0 0
        %784 = vperm.xlu0 %783, %v750
        %v785 = vpop.permute.xlu0 %784
        %788 = vset.pattern.permute.xlu0 0
        %789 = vperm.xlu0 %788, %v751
        %v790 = vpop.permute.xlu0 %789
        %v800 = vunpack.c.l.b16 %v736
        %v801 = vunpack.c.l.b16 %v737
        %v802 = vunpack.c.l.b16 %v738
        %v803 = vunpack.c.l.b16 %v739
        %v804 = vunpack.c.l.b16 %v740
        %v805 = vunpack.c.l.b16 %v741
        %v806 = vunpack.c.l.b16 %v742
        %v807 = vunpack.c.l.b16 %v743
        %v808 = vpack.c.b16 %v801, %v800
        %v809 = vpack.c.b16 %v803, %v802
        %v810 = vpack.c.b16 %v805, %v804
        %v811 = vpack.c.b16 %v807, %v806
        %vm812 = vcmask 523264
        %v814 = vsel %vm812, %v808, 0
        %v817 = vsel %vm812, %v809, 0
        %v820 = vsel %vm812, %v810, 0
        %v823 = vsel %vm812, %v811, 0
        %825 = vmatprep.subr.bf16.mxu0 0
        %826 = vmatpush1.bf16.msra.mxu0 0
        %827 = vmatprep.subr.bf16.mxu0 0
        %828 = vmatpush1.bf16.msra.mxu0 0
        %829 = vmatprep.subr.bf16.mxu0 0
        %830 = vmatpush1.bf16.msra.mxu0 0
        %831 = vmatprep.subr.bf16.mxu0 0
        %832 = vmatpush1.bf16.msra.mxu0 0
        %833 = vmatprep.subr.bf16.mxu0 %v733
        %834 = vmatpush1.bf16.msra.mxu0 %v732
        %835 = vmatprep.subr.bf16.mxu0 %v729
        %836 = vmatpush1.bf16.msra.mxu0 %v728
        %837 = vmatprep.subr.bf16.mxu0 %v725
        %838 = vmatpush1.bf16.msra.mxu0 %v724
        %839 = vmatprep.subr.bf16.mxu0 %v721
        %840 = vmatpush1.bf16.msra.mxu0 %v720
        %841 = vmatprep.subr.bf16.mxu0 0
        %842 = vmatpush2.bf16.msra.mxu0 0
        %843 = vmatprep.subr.bf16.mxu0 0
        %844 = vmatpush2.bf16.msra.mxu0 0
        %845 = vmatprep.subr.bf16.mxu0 0
        %846 = vmatpush2.bf16.msra.mxu0 0
        %847 = vmatprep.subr.bf16.mxu0 0
        %848 = vmatpush2.bf16.msra.mxu0 0
        %849 = vmatprep.subr.bf16.mxu0 0
        %850 = vmatpush2.bf16.msra.mxu0 0
        %851 = vmatprep.subr.bf16.mxu0 0
        %852 = vmatpush2.bf16.msra.mxu0 0
        %853 = vmatprep.subr.bf16.mxu0 0
        %854 = vmatpush2.bf16.msra.mxu0 0
        %855 = vmatprep.subr.bf16.mxu0 0
        %856 = vmatpush2.bf16.msra.mxu0 0
        %857 = vmatprep.mubr.bf16.mxu0 0
        %858 = vmatmul.mubr.bf16.gmra.mxu0 %v814
        %v859 = vpop.f32.mrf.mxu0
        %v860 = vadd.f32 %v755, %v859
        %v861 = vpop.f32.mrf.mxu0
        %v862 = vadd.f32 %v755, %v861
        %v863 = vpop.f32.mrf.mxu0
        %v864 = vadd.f32 %v760, %v863
        %v865 = vpop.f32.mrf.mxu0
        %v866 = vadd.f32 %v760, %v865
        %867 = vmatprep.mubr.bf16.mxu0 0
        %868 = vmatmul.mubr.bf16.gmra.mxu0 %v817
        %v869 = vpop.f32.mrf.mxu0
        %v870 = vadd.f32 %v765, %v869
        %v871 = vpop.f32.mrf.mxu0
        %v872 = vadd.f32 %v765, %v871
        %v873 = vpop.f32.mrf.mxu0
        %v874 = vadd.f32 %v770, %v873
        %v875 = vpop.f32.mrf.mxu0
        %v876 = vadd.f32 %v770, %v875
        %877 = vmatprep.mubr.bf16.mxu0 0
        %878 = vmatmul.mubr.bf16.gmra.mxu0 %v820
        %v879 = vpop.f32.mrf.mxu0
        %v880 = vadd.f32 %v775, %v879
        %v881 = vpop.f32.mrf.mxu0
        %v882 = vadd.f32 %v775, %v881
        %v883 = vpop.f32.mrf.mxu0
        %v884 = vadd.f32 %v780, %v883
        %v885 = vpop.f32.mrf.mxu0
        %v886 = vadd.f32 %v780, %v885
        %887 = vmatprep.mubr.bf16.mxu0 0
        %888 = vmatmul.mubr.bf16.gmra.mxu0 %v823
        %v889 = vpop.f32.mrf.mxu0
        %v890 = vadd.f32 %v785, %v889
        %v891 = vpop.f32.mrf.mxu0
        %v892 = vadd.f32 %v785, %v891
        %v893 = vpop.f32.mrf.mxu0
        %v894 = vadd.f32 %v790, %v893
        %v895 = vpop.f32.mrf.mxu0
        %v896 = vadd.f32 %v790, %v895
        %897 = vdwg.mxu0
        %898 = vmatprep.subr.bf16.mxu0 0
        %899 = vmatpush1.bf16.msra.mxu0 0
        %900 = vmatprep.subr.bf16.mxu0 0
        %901 = vmatpush1.bf16.msra.mxu0 0
        %902 = vmatprep.subr.bf16.mxu0 0
        %903 = vmatpush1.bf16.msra.mxu0 0
        %904 = vmatprep.subr.bf16.mxu0 0
        %905 = vmatpush1.bf16.msra.mxu0 0
        %906 = vmatprep.subr.bf16.mxu0 %v735
        %907 = vmatpush1.bf16.msra.mxu0 %v734
        %908 = vmatprep.subr.bf16.mxu0 %v731
        %909 = vmatpush1.bf16.msra.mxu0 %v730
        %910 = vmatprep.subr.bf16.mxu0 %v727
        %911 = vmatpush1.bf16.msra.mxu0 %v726
        %912 = vmatprep.subr.bf16.mxu0 %v723
        %913 = vmatpush1.bf16.msra.mxu0 %v722
        %914 = vmatprep.subr.bf16.mxu0 0
        %915 = vmatpush2.bf16.msra.mxu0 0
        %916 = vmatprep.subr.bf16.mxu0 0
        %917 = vmatpush2.bf16.msra.mxu0 0
        %918 = vmatprep.subr.bf16.mxu0 0
        %919 = vmatpush2.bf16.msra.mxu0 0
        %920 = vmatprep.subr.bf16.mxu0 0
        %921 = vmatpush2.bf16.msra.mxu0 0
        %922 = vmatprep.subr.bf16.mxu0 0
        %923 = vmatpush2.bf16.msra.mxu0 0
        %924 = vmatprep.subr.bf16.mxu0 0
        %925 = vmatpush2.bf16.msra.mxu0 0
        %926 = vmatprep.subr.bf16.mxu0 0
        %927 = vmatpush2.bf16.msra.mxu0 0
        %928 = vmatprep.subr.bf16.mxu0 0
        %929 = vmatpush2.bf16.msra.mxu0 0
        %930 = vmatprep.mubr.bf16.mxu0 0
        %931 = vmatmul.mubr.bf16.gmra.mxu0 %v814
        %v932 = vpop.f32.mrf.mxu0
        %v933 = vadd.f32 %v755, %v932
        %v934 = vpop.f32.mrf.mxu0
        %v935 = vadd.f32 %v755, %v934
        %v936 = vpop.f32.mrf.mxu0
        %v937 = vadd.f32 %v760, %v936
        %v938 = vpop.f32.mrf.mxu0
        %v939 = vadd.f32 %v760, %v938
        %940 = vmatprep.mubr.bf16.mxu0 0
        %941 = vmatmul.mubr.bf16.gmra.mxu0 %v817
        %v942 = vpop.f32.mrf.mxu0
        %v943 = vadd.f32 %v765, %v942
        %v944 = vpop.f32.mrf.mxu0
        %v945 = vadd.f32 %v765, %v944
        %v946 = vpop.f32.mrf.mxu0
        %v947 = vadd.f32 %v770, %v946
        %v948 = vpop.f32.mrf.mxu0
        %v949 = vadd.f32 %v770, %v948
        %950 = vmatprep.mubr.bf16.mxu0 0
        %951 = vmatmul.mubr.bf16.gmra.mxu0 %v820
        %v952 = vpop.f32.mrf.mxu0
        %v953 = vadd.f32 %v775, %v952
        %v954 = vpop.f32.mrf.mxu0
        %v955 = vadd.f32 %v775, %v954
        %v956 = vpop.f32.mrf.mxu0
        %v957 = vadd.f32 %v780, %v956
        %v958 = vpop.f32.mrf.mxu0
        %v959 = vadd.f32 %v780, %v958
        %960 = vmatprep.mubr.bf16.mxu0 0
        %961 = vmatmul.mubr.bf16.gmra.mxu0 %v823
        %v962 = vpop.f32.mrf.mxu0
        %v963 = vadd.f32 %v785, %v962
        %v964 = vpop.f32.mrf.mxu0
        %v965 = vadd.f32 %v785, %v964
        %v966 = vpop.f32.mrf.mxu0
        %v967 = vadd.f32 %v790, %v966
        %v968 = vpop.f32.mrf.mxu0
        %v969 = vadd.f32 %v790, %v968
        %970 = vdwg.mxu0
        %v971 = vmax.f32 %v860, 0.0
        %v972 = vmax.f32 %v862, 0.0
        %v973 = vmax.f32 %v933, 0.0
        %v974 = vmax.f32 %v935, 0.0
        %v975 = vmax.f32 %v864, 0.0
        %v976 = vmax.f32 %v866, 0.0
        %v977 = vmax.f32 %v937, 0.0
        %v978 = vmax.f32 %v939, 0.0
        %v979 = vmax.f32 %v870, 0.0
        %v980 = vmax.f32 %v872, 0.0
        %v981 = vmax.f32 %v943, 0.0
        %v982 = vmax.f32 %v945, 0.0
        %v983 = vmax.f32 %v874, 0.0
        %v984 = vmax.f32 %v876, 0.0
        %v985 = vmax.f32 %v947, 0.0
        %v986 = vmax.f32 %v949, 0.0
        %v987 = vmax.f32 %v880, 0.0
        %v988 = vmax.f32 %v882, 0.0
        %v989 = vmax.f32 %v953, 0.0
        %v990 = vmax.f32 %v955, 0.0
        %v991 = vmax.f32 %v884, 0.0
        %v992 = vmax.f32 %v886, 0.0
        %v993 = vmax.f32 %v957, 0.0
        %v994 = vmax.f32 %v959, 0.0
        %v995 = vmax.f32 %v890, 0.0
        %v996 = vmax.f32 %v892, 0.0
        %v997 = vmax.f32 %v963, 0.0
        %v998 = vmax.f32 %v965, 0.0
        %v999 = vmax.f32 %v894, 0.0
        %v1000 = vmax.f32 %v896, 0.0
        %v1001 = vmax.f32 %v967, 0.0
        %v1002 = vmax.f32 %v969, 0.0
        %v1003 = vpack.c.bf16 %v975, %v971
        %v1004 = vpack.c.bf16 %v976, %v972
        %v1005 = vpack.c.bf16 %v977, %v973
        %v1006 = vpack.c.bf16 %v978, %v974
        %v1007 = vpack.c.bf16 %v983, %v979
        %v1008 = vpack.c.bf16 %v984, %v980
        %v1009 = vpack.c.bf16 %v985, %v981
        %v1010 = vpack.c.bf16 %v986, %v982
        %v1011 = vpack.c.bf16 %v991, %v987
        %v1012 = vpack.c.bf16 %v992, %v988
        %v1013 = vpack.c.bf16 %v993, %v989
        %v1014 = vpack.c.bf16 %v994, %v990
        %v1015 = vpack.c.bf16 %v999, %v995
        %v1016 = vpack.c.bf16 %v1000, %v996
        %v1017 = vpack.c.bf16 %v1001, %v997
        %v1018 = vpack.c.bf16 %v1002, %v998
        %v1019 = vld [vmem:[%s5] sm:$0xf]
        %v1020 = vld [vmem:[%s5 + $0x4] sm:$0xf]
        %v1021 = vld [vmem:[%s5 + $0x8] sm:$0xf]
        %v1022 = vld [vmem:[%s5 + $0xc] sm:$0xf]
        %v1023 = vld [vmem:[%s5 + $0x10] sm:$0xf]
        %v1024 = vld [vmem:[%s5 + $0x14] sm:$0xf]
        %v1025 = vld [vmem:[%s5 + $0x18] sm:$0xf]
        %v1026 = vld [vmem:[%s5 + $0x1c] sm:$0xf]
        %v1027 = vld [vmem:[%s6] sm:$0xff]
        %v1028 = vld [vmem:[%s6 + $0x8] sm:$0xff]
        %v1029 = vld [vmem:[%s6 + $0x10] sm:$0xff]
        %v1030 = vld [vmem:[%s6 + $0x18] sm:$0xff]
        %v1031 = vld [vmem:[%s6 + $0x20] sm:$0xff]
        %v1032 = vld [vmem:[%s6 + $0x28] sm:$0xff]
        %v1033 = vld [vmem:[%s6 + $0x30] sm:$0xff]
        %v1034 = vld [vmem:[%s6 + $0x38] sm:$0xff]
        %1036 = vset.pattern.permute.xlu0 0
        %1037 = vperm.xlu0 %1036, %v1027
        %v1038 = vpop.permute.xlu0 %1037
        %1041 = vset.pattern.permute.xlu0 0
        %1042 = vperm.xlu0 %1041, %v1028
        %v1043 = vpop.permute.xlu0 %1042
        %1046 = vset.pattern.permute.xlu0 0
        %1047 = vperm.xlu0 %1046, %v1029
        %v1048 = vpop.permute.xlu0 %1047
        %1051 = vset.pattern.permute.xlu0 0
        %1052 = vperm.xlu0 %1051, %v1030
        %v1053 = vpop.permute.xlu0 %1052
        %1056 = vset.pattern.permute.xlu0 0
        %1057 = vperm.xlu0 %1056, %v1031
        %v1058 = vpop.permute.xlu0 %1057
        %1061 = vset.pattern.permute.xlu0 0
        %1062 = vperm.xlu0 %1061, %v1032
        %v1063 = vpop.permute.xlu0 %1062
        %1066 = vset.pattern.permute.xlu0 0
        %1067 = vperm.xlu0 %1066, %v1033
        %v1068 = vpop.permute.xlu0 %1067
        %1071 = vset.pattern.permute.xlu0 0
        %1072 = vperm.xlu0 %1071, %v1034
        %v1073 = vpop.permute.xlu0 %1072
        %v1083 = vunpack.c.l.b16 %v1019
        %v1084 = vunpack.c.l.b16 %v1020
        %v1085 = vunpack.c.l.b16 %v1021
        %v1086 = vunpack.c.l.b16 %v1022
        %v1087 = vunpack.c.l.b16 %v1023
        %v1088 = vunpack.c.l.b16 %v1024
        %v1089 = vunpack.c.l.b16 %v1025
        %v1090 = vunpack.c.l.b16 %v1026
        %v1091 = vpack.c.b16 %v1084, %v1083
        %v1092 = vpack.c.b16 %v1086, %v1085
        %v1093 = vpack.c.b16 %v1088, %v1087
        %v1094 = vpack.c.b16 %v1090, %v1089
        %v1096 = vsel %vm812, %v1091, 0
        %v1099 = vsel %vm812, %v1092, 0
        %v1102 = vsel %vm812, %v1093, 0
        %v1105 = vsel %vm812, %v1094, 0
        %1107 = vmatprep.subr.bf16.mxu0 0
        %1108 = vmatpush1.bf16.msra.mxu0 0
        %1109 = vmatprep.subr.bf16.mxu0 0
        %1110 = vmatpush1.bf16.msra.mxu0 0
        %1111 = vmatprep.subr.bf16.mxu0 0
        %1112 = vmatpush1.bf16.msra.mxu0 0
        %1113 = vmatprep.subr.bf16.mxu0 0
        %1114 = vmatpush1.bf16.msra.mxu0 0
        %1115 = vmatprep.subr.bf16.mxu0 %v1016
        %1116 = vmatpush1.bf16.msra.mxu0 %v1015
        %1117 = vmatprep.subr.bf16.mxu0 %v1012
        %1118 = vmatpush1.bf16.msra.mxu0 %v1011
        %1119 = vmatprep.subr.bf16.mxu0 %v1008
        %1120 = vmatpush1.bf16.msra.mxu0 %v1007
        %1121 = vmatprep.subr.bf16.mxu0 %v1004
        %1122 = vmatpush1.bf16.msra.mxu0 %v1003
        %1123 = vmatprep.subr.bf16.mxu0 0
        %1124 = vmatpush2.bf16.msra.mxu0 0
        %1125 = vmatprep.subr.bf16.mxu0 0
        %1126 = vmatpush2.bf16.msra.mxu0 0
        %1127 = vmatprep.subr.bf16.mxu0 0
        %1128 = vmatpush2.bf16.msra.mxu0 0
        %1129 = vmatprep.subr.bf16.mxu0 0
        %1130 = vmatpush2.bf16.msra.mxu0 0
        %1131 = vmatprep.subr.bf16.mxu0 0
        %1132 = vmatpush2.bf16.msra.mxu0 0
        %1133 = vmatprep.subr.bf16.mxu0 0
        %1134 = vmatpush2.bf16.msra.mxu0 0
        %1135 = vmatprep.subr.bf16.mxu0 0
        %1136 = vmatpush2.bf16.msra.mxu0 0
        %1137 = vmatprep.subr.bf16.mxu0 0
        %1138 = vmatpush2.bf16.msra.mxu0 0
        %1139 = vmatprep.mubr.bf16.mxu0 0
        %1140 = vmatmul.mubr.bf16.gmra.mxu0 %v1096
        %v1141 = vpop.f32.mrf.mxu0
        %v1142 = vadd.f32 %v1038, %v1141
        %v1143 = vpop.f32.mrf.mxu0
        %v1144 = vadd.f32 %v1038, %v1143
        %v1145 = vpop.f32.mrf.mxu0
        %v1146 = vadd.f32 %v1043, %v1145
        %v1147 = vpop.f32.mrf.mxu0
        %v1148 = vadd.f32 %v1043, %v1147
        %1149 = vmatprep.mubr.bf16.mxu0 0
        %1150 = vmatmul.mubr.bf16.gmra.mxu0 %v1099
        %v1151 = vpop.f32.mrf.mxu0
        %v1152 = vadd.f32 %v1048, %v1151
        %v1153 = vpop.f32.mrf.mxu0
        %v1154 = vadd.f32 %v1048, %v1153
        %v1155 = vpop.f32.mrf.mxu0
        %v1156 = vadd.f32 %v1053, %v1155
        %v1157 = vpop.f32.mrf.mxu0
        %v1158 = vadd.f32 %v1053, %v1157
        %1159 = vmatprep.mubr.bf16.mxu0 0
        %1160 = vmatmul.mubr.bf16.gmra.mxu0 %v1102
        %v1161 = vpop.f32.mrf.mxu0
        %v1162 = vadd.f32 %v1058, %v1161
        %v1163 = vpop.f32.mrf.mxu0
        %v1164 = vadd.f32 %v1058, %v1163
        %v1165 = vpop.f32.mrf.mxu0
        %v1166 = vadd.f32 %v1063, %v1165
        %v1167 = vpop.f32.mrf.mxu0
        %v1168 = vadd.f32 %v1063, %v1167
        %1169 = vmatprep.mubr.bf16.mxu0 0
        %1170 = vmatmul.mubr.bf16.gmra.mxu0 %v1105
        %v1171 = vpop.f32.mrf.mxu0
        %v1172 = vadd.f32 %v1068, %v1171
        %v1173 = vpop.f32.mrf.mxu0
        %v1174 = vadd.f32 %v1068, %v1173
        %v1175 = vpop.f32.mrf.mxu0
        %v1176 = vadd.f32 %v1073, %v1175
        %v1177 = vpop.f32.mrf.mxu0
        %v1178 = vadd.f32 %v1073, %v1177
        %1179 = vdwg.mxu0
        %1180 = vmatprep.subr.bf16.mxu0 0
        %1181 = vmatpush1.bf16.msra.mxu0 0
        %1182 = vmatprep.subr.bf16.mxu0 0
        %1183 = vmatpush1.bf16.msra.mxu0 0
        %1184 = vmatprep.subr.bf16.mxu0 0
        %1185 = vmatpush1.bf16.msra.mxu0 0
        %1186 = vmatprep.subr.bf16.mxu0 0
        %1187 = vmatpush1.bf16.msra.mxu0 0
        %1188 = vmatprep.subr.bf16.mxu0 %v1018
        %1189 = vmatpush1.bf16.msra.mxu0 %v1017
        %1190 = vmatprep.subr.bf16.mxu0 %v1014
        %1191 = vmatpush1.bf16.msra.mxu0 %v1013
        %1192 = vmatprep.subr.bf16.mxu0 %v1010
        %1193 = vmatpush1.bf16.msra.mxu0 %v1009
        %1194 = vmatprep.subr.bf16.mxu0 %v1006
        %1195 = vmatpush1.bf16.msra.mxu0 %v1005
        %1196 = vmatprep.subr.bf16.mxu0 0
        %1197 = vmatpush2.bf16.msra.mxu0 0
        %1198 = vmatprep.subr.bf16.mxu0 0
        %1199 = vmatpush2.bf16.msra.mxu0 0
        %1200 = vmatprep.subr.bf16.mxu0 0
        %1201 = vmatpush2.bf16.msra.mxu0 0
        %1202 = vmatprep.subr.bf16.mxu0 0
        %1203 = vmatpush2.bf16.msra.mxu0 0
        %1204 = vmatprep.subr.bf16.mxu0 0
        %1205 = vmatpush2.bf16.msra.mxu0 0
        %1206 = vmatprep.subr.bf16.mxu0 0
        %1207 = vmatpush2.bf16.msra.mxu0 0
        %1208 = vmatprep.subr.bf16.mxu0 0
        %1209 = vmatpush2.bf16.msra.mxu0 0
        %1210 = vmatprep.subr.bf16.mxu0 0
        %1211 = vmatpush2.bf16.msra.mxu0 0
        %1212 = vmatprep.mubr.bf16.mxu0 0
        %1213 = vmatmul.mubr.bf16.gmra.mxu0 %v1096
        %v1214 = vpop.f32.mrf.mxu0
        %v1215 = vadd.f32 %v1038, %v1214
        %v1216 = vpop.f32.mrf.mxu0
        %v1217 = vadd.f32 %v1038, %v1216
        %v1218 = vpop.f32.mrf.mxu0
        %v1219 = vadd.f32 %v1043, %v1218
        %v1220 = vpop.f32.mrf.mxu0
        %v1221 = vadd.f32 %v1043, %v1220
        %1222 = vmatprep.mubr.bf16.mxu0 0
        %1223 = vmatmul.mubr.bf16.gmra.mxu0 %v1099
        %v1224 = vpop.f32.mrf.mxu0
        %v1225 = vadd.f32 %v1048, %v1224
        %v1226 = vpop.f32.mrf.mxu0
        %v1227 = vadd.f32 %v1048, %v1226
        %v1228 = vpop.f32.mrf.mxu0
        %v1229 = vadd.f32 %v1053, %v1228
        %v1230 = vpop.f32.mrf.mxu0
        %v1231 = vadd.f32 %v1053, %v1230
        %1232 = vmatprep.mubr.bf16.mxu0 0
        %1233 = vmatmul.mubr.bf16.gmra.mxu0 %v1102
        %v1234 = vpop.f32.mrf.mxu0
        %v1235 = vadd.f32 %v1058, %v1234
        %v1236 = vpop.f32.mrf.mxu0
        %v1237 = vadd.f32 %v1058, %v1236
        %v1238 = vpop.f32.mrf.mxu0
        %v1239 = vadd.f32 %v1063, %v1238
        %v1240 = vpop.f32.mrf.mxu0
        %v1241 = vadd.f32 %v1063, %v1240
        %1242 = vmatprep.mubr.bf16.mxu0 0
        %1243 = vmatmul.mubr.bf16.gmra.mxu0 %v1105
        %v1244 = vpop.f32.mrf.mxu0
        %v1245 = vadd.f32 %v1068, %v1244
        %v1246 = vpop.f32.mrf.mxu0
        %v1247 = vadd.f32 %v1068, %v1246
        %v1248 = vpop.f32.mrf.mxu0
        %v1249 = vadd.f32 %v1073, %v1248
        %v1250 = vpop.f32.mrf.mxu0
        %v1251 = vadd.f32 %v1073, %v1250
        %1252 = vdwg.mxu0
        %v1253 = vmax.f32 %v1142, 0.0
        %v1254 = vmax.f32 %v1144, 0.0
        %v1255 = vmax.f32 %v1215, 0.0
        %v1256 = vmax.f32 %v1217, 0.0
        %v1257 = vmax.f32 %v1146, 0.0
        %v1258 = vmax.f32 %v1148, 0.0
        %v1259 = vmax.f32 %v1219, 0.0
        %v1260 = vmax.f32 %v1221, 0.0
        %v1261 = vmax.f32 %v1152, 0.0
        %v1262 = vmax.f32 %v1154, 0.0
        %v1263 = vmax.f32 %v1225, 0.0
        %v1264 = vmax.f32 %v1227, 0.0
        %v1265 = vmax.f32 %v1156, 0.0
        %v1266 = vmax.f32 %v1158, 0.0
        %v1267 = vmax.f32 %v1229, 0.0
        %v1268 = vmax.f32 %v1231, 0.0
        %v1269 = vmax.f32 %v1162, 0.0
        %v1270 = vmax.f32 %v1164, 0.0
        %v1271 = vmax.f32 %v1235, 0.0
        %v1272 = vmax.f32 %v1237, 0.0
        %v1273 = vmax.f32 %v1166, 0.0
        %v1274 = vmax.f32 %v1168, 0.0
        %v1275 = vmax.f32 %v1239, 0.0
        %v1276 = vmax.f32 %v1241, 0.0
        %v1277 = vmax.f32 %v1172, 0.0
        %v1278 = vmax.f32 %v1174, 0.0
        %v1279 = vmax.f32 %v1245, 0.0
        %v1280 = vmax.f32 %v1247, 0.0
        %v1281 = vmax.f32 %v1176, 0.0
        %v1282 = vmax.f32 %v1178, 0.0
        %v1283 = vmax.f32 %v1249, 0.0
        %v1284 = vmax.f32 %v1251, 0.0
        %v1285 = vpack.c.bf16 %v1257, %v1253
        %v1286 = vpack.c.bf16 %v1258, %v1254
        %v1287 = vpack.c.bf16 %v1259, %v1255
        %v1288 = vpack.c.bf16 %v1260, %v1256
        %v1289 = vpack.c.bf16 %v1265, %v1261
        %v1290 = vpack.c.bf16 %v1266, %v1262
        %v1291 = vpack.c.bf16 %v1267, %v1263
        %v1292 = vpack.c.bf16 %v1268, %v1264
        %v1293 = vpack.c.bf16 %v1273, %v1269
        %v1294 = vpack.c.bf16 %v1274, %v1270
        %v1295 = vpack.c.bf16 %v1275, %v1271
        %v1296 = vpack.c.bf16 %v1276, %v1272
        %v1297 = vpack.c.bf16 %v1281, %v1277
        %v1298 = vpack.c.bf16 %v1282, %v1278
        %v1299 = vpack.c.bf16 %v1283, %v1279
        %v1300 = vpack.c.bf16 %v1284, %v1280
        %v1301 = vld [vmem:[%s7] sm:$0xf]
        %v1302 = vld [vmem:[%s7 + $0x4] sm:$0xf]
        %v1303 = vld [vmem:[%s7 + $0x8] sm:$0xf]
        %v1304 = vld [vmem:[%s7 + $0xc] sm:$0xf]
        %v1305 = vld [vmem:[%s7 + $0x10] sm:$0xf]
        %v1306 = vld [vmem:[%s7 + $0x14] sm:$0xf]
        %v1307 = vld [vmem:[%s7 + $0x18] sm:$0xf]
        %v1308 = vld [vmem:[%s7 + $0x1c] sm:$0xf]
        %v1309 = vld [vmem:[%s8] sm:$0xff]
        %v1310 = vld [vmem:[%s8 + $0x8] sm:$0xff]
        %v1311 = vld [vmem:[%s8 + $0x10] sm:$0xff]
        %v1312 = vld [vmem:[%s8 + $0x18] sm:$0xff]
        %v1313 = vld [vmem:[%s8 + $0x20] sm:$0xff]
        %v1314 = vld [vmem:[%s8 + $0x28] sm:$0xff]
        %v1315 = vld [vmem:[%s8 + $0x30] sm:$0xff]
        %v1316 = vld [vmem:[%s8 + $0x38] sm:$0xff]
        %1318 = vset.pattern.permute.xlu0 0
        %1319 = vperm.xlu0 %1318, %v1309
        %v1320 = vpop.permute.xlu0 %1319
        %1323 = vset.pattern.permute.xlu0 0
        %1324 = vperm.xlu0 %1323, %v1310
        %v1325 = vpop.permute.xlu0 %1324
        %1328 = vset.pattern.permute.xlu0 0
        %1329 = vperm.xlu0 %1328, %v1311
        %v1330 = vpop.permute.xlu0 %1329
        %1333 = vset.pattern.permute.xlu0 0
        %1334 = vperm.xlu0 %1333, %v1312
        %v1335 = vpop.permute.xlu0 %1334
        %1338 = vset.pattern.permute.xlu0 0
        %1339 = vperm.xlu0 %1338, %v1313
        %v1340 = vpop.permute.xlu0 %1339
        %1343 = vset.pattern.permute.xlu0 0
        %1344 = vperm.xlu0 %1343, %v1314
        %v1345 = vpop.permute.xlu0 %1344
        %1348 = vset.pattern.permute.xlu0 0
        %1349 = vperm.xlu0 %1348, %v1315
        %v1350 = vpop.permute.xlu0 %1349
        %1353 = vset.pattern.permute.xlu0 0
        %1354 = vperm.xlu0 %1353, %v1316
        %v1355 = vpop.permute.xlu0 %1354
        %v1365 = vunpack.c.l.b16 %v1301
        %v1366 = vunpack.c.l.b16 %v1302
        %v1367 = vunpack.c.l.b16 %v1303
        %v1368 = vunpack.c.l.b16 %v1304
        %v1369 = vunpack.c.l.b16 %v1305
        %v1370 = vunpack.c.l.b16 %v1306
        %v1371 = vunpack.c.l.b16 %v1307
        %v1372 = vunpack.c.l.b16 %v1308
        %v1373 = vpack.c.b16 %v1366, %v1365
        %v1374 = vpack.c.b16 %v1368, %v1367
        %v1375 = vpack.c.b16 %v1370, %v1369
        %v1376 = vpack.c.b16 %v1372, %v1371
        %v1378 = vsel %vm812, %v1373, 0
        %v1381 = vsel %vm812, %v1374, 0
        %v1384 = vsel %vm812, %v1375, 0
        %v1387 = vsel %vm812, %v1376, 0
        %1389 = vmatprep.subr.bf16.mxu0 0
        %1390 = vmatpush1.bf16.msra.mxu0 0
        %1391 = vmatprep.subr.bf16.mxu0 0
        %1392 = vmatpush1.bf16.msra.mxu0 0
        %1393 = vmatprep.subr.bf16.mxu0 0
        %1394 = vmatpush1.bf16.msra.mxu0 0
        %1395 = vmatprep.subr.bf16.mxu0 0
        %1396 = vmatpush1.bf16.msra.mxu0 0
        %1397 = vmatprep.subr.bf16.mxu0 %v1298
        %1398 = vmatpush1.bf16.msra.mxu0 %v1297
        %1399 = vmatprep.subr.bf16.mxu0 %v1294
        %1400 = vmatpush1.bf16.msra.mxu0 %v1293
        %1401 = vmatprep.subr.bf16.mxu0 %v1290
        %1402 = vmatpush1.bf16.msra.mxu0 %v1289
        %1403 = vmatprep.subr.bf16.mxu0 %v1286
        %1404 = vmatpush1.bf16.msra.mxu0 %v1285
        %1405 = vmatprep.subr.bf16.mxu0 0
        %1406 = vmatpush2.bf16.msra.mxu0 0
        %1407 = vmatprep.subr.bf16.mxu0 0
        %1408 = vmatpush2.bf16.msra.mxu0 0
        %1409 = vmatprep.subr.bf16.mxu0 0
        %1410 = vmatpush2.bf16.msra.mxu0 0
        %1411 = vmatprep.subr.bf16.mxu0 0
        %1412 = vmatpush2.bf16.msra.mxu0 0
        %1413 = vmatprep.subr.bf16.mxu0 0
        %1414 = vmatpush2.bf16.msra.mxu0 0
        %1415 = vmatprep.subr.bf16.mxu0 0
        %1416 = vmatpush2.bf16.msra.mxu0 0
        %1417 = vmatprep.subr.bf16.mxu0 0
        %1418 = vmatpush2.bf16.msra.mxu0 0
        %1419 = vmatprep.subr.bf16.mxu0 0
        %1420 = vmatpush2.bf16.msra.mxu0 0
        %1421 = vmatprep.mubr.bf16.mxu0 0
        %1422 = vmatmul.mubr.bf16.gmra.mxu0 %v1378
        %v1423 = vpop.f32.mrf.mxu0
        %v1424 = vadd.f32 %v1320, %v1423
        %v1425 = vpop.f32.mrf.mxu0
        %v1426 = vadd.f32 %v1320, %v1425
        %v1427 = vpop.f32.mrf.mxu0
        %v1428 = vadd.f32 %v1325, %v1427
        %v1429 = vpop.f32.mrf.mxu0
        %v1430 = vadd.f32 %v1325, %v1429
        %1431 = vmatprep.mubr.bf16.mxu0 0
        %1432 = vmatmul.mubr.bf16.gmra.mxu0 %v1381
        %v1433 = vpop.f32.mrf.mxu0
        %v1434 = vadd.f32 %v1330, %v1433
        %v1435 = vpop.f32.mrf.mxu0
        %v1436 = vadd.f32 %v1330, %v1435
        %v1437 = vpop.f32.mrf.mxu0
        %v1438 = vadd.f32 %v1335, %v1437
        %v1439 = vpop.f32.mrf.mxu0
        %v1440 = vadd.f32 %v1335, %v1439
        %1441 = vmatprep.mubr.bf16.mxu0 0
        %1442 = vmatmul.mubr.bf16.gmra.mxu0 %v1384
        %v1443 = vpop.f32.mrf.mxu0
        %v1444 = vadd.f32 %v1340, %v1443
        %v1445 = vpop.f32.mrf.mxu0
        %v1446 = vadd.f32 %v1340, %v1445
        %v1447 = vpop.f32.mrf.mxu0
        %v1448 = vadd.f32 %v1345, %v1447
        %v1449 = vpop.f32.mrf.mxu0
        %v1450 = vadd.f32 %v1345, %v1449
        %1451 = vmatprep.mubr.bf16.mxu0 0
        %1452 = vmatmul.mubr.bf16.gmra.mxu0 %v1387
        %v1453 = vpop.f32.mrf.mxu0
        %v1454 = vadd.f32 %v1350, %v1453
        %v1455 = vpop.f32.mrf.mxu0
        %v1456 = vadd.f32 %v1350, %v1455
        %v1457 = vpop.f32.mrf.mxu0
        %v1458 = vadd.f32 %v1355, %v1457
        %v1459 = vpop.f32.mrf.mxu0
        %v1460 = vadd.f32 %v1355, %v1459
        %1461 = vdwg.mxu0
        %1462 = vmatprep.subr.bf16.mxu0 0
        %1463 = vmatpush1.bf16.msra.mxu0 0
        %1464 = vmatprep.subr.bf16.mxu0 0
        %1465 = vmatpush1.bf16.msra.mxu0 0
        %1466 = vmatprep.subr.bf16.mxu0 0
        %1467 = vmatpush1.bf16.msra.mxu0 0
        %1468 = vmatprep.subr.bf16.mxu0 0
        %1469 = vmatpush1.bf16.msra.mxu0 0
        %1470 = vmatprep.subr.bf16.mxu0 %v1300
        %1471 = vmatpush1.bf16.msra.mxu0 %v1299
        %1472 = vmatprep.subr.bf16.mxu0 %v1296
        %1473 = vmatpush1.bf16.msra.mxu0 %v1295
        %1474 = vmatprep.subr.bf16.mxu0 %v1292
        %1475 = vmatpush1.bf16.msra.mxu0 %v1291
        %1476 = vmatprep.subr.bf16.mxu0 %v1288
        %1477 = vmatpush1.bf16.msra.mxu0 %v1287
        %1478 = vmatprep.subr.bf16.mxu0 0
        %1479 = vmatpush2.bf16.msra.mxu0 0
        %1480 = vmatprep.subr.bf16.mxu0 0
        %1481 = vmatpush2.bf16.msra.mxu0 0
        %1482 = vmatprep.subr.bf16.mxu0 0
        %1483 = vmatpush2.bf16.msra.mxu0 0
        %1484 = vmatprep.subr.bf16.mxu0 0
        %1485 = vmatpush2.bf16.msra.mxu0 0
        %1486 = vmatprep.subr.bf16.mxu0 0
        %1487 = vmatpush2.bf16.msra.mxu0 0
        %1488 = vmatprep.subr.bf16.mxu0 0
        %1489 = vmatpush2.bf16.msra.mxu0 0
        %1490 = vmatprep.subr.bf16.mxu0 0
        %1491 = vmatpush2.bf16.msra.mxu0 0
        %1492 = vmatprep.subr.bf16.mxu0 0
        %1493 = vmatpush2.bf16.msra.mxu0 0
        %1494 = vmatprep.mubr.bf16.mxu0 0
        %1495 = vmatmul.mubr.bf16.gmra.mxu0 %v1378
        %v1496 = vpop.f32.mrf.mxu0
        %v1497 = vadd.f32 %v1320, %v1496
        %v1498 = vpop.f32.mrf.mxu0
        %v1499 = vadd.f32 %v1320, %v1498
        %v1500 = vpop.f32.mrf.mxu0
        %v1501 = vadd.f32 %v1325, %v1500
        %v1502 = vpop.f32.mrf.mxu0
        %v1503 = vadd.f32 %v1325, %v1502
        %1504 = vmatprep.mubr.bf16.mxu0 0
        %1505 = vmatmul.mubr.bf16.gmra.mxu0 %v1381
        %v1506 = vpop.f32.mrf.mxu0
        %v1507 = vadd.f32 %v1330, %v1506
        %v1508 = vpop.f32.mrf.mxu0
        %v1509 = vadd.f32 %v1330, %v1508
        %v1510 = vpop.f32.mrf.mxu0
        %v1511 = vadd.f32 %v1335, %v1510
        %v1512 = vpop.f32.mrf.mxu0
        %v1513 = vadd.f32 %v1335, %v1512
        %1514 = vmatprep.mubr.bf16.mxu0 0
        %1515 = vmatmul.mubr.bf16.gmra.mxu0 %v1384
        %v1516 = vpop.f32.mrf.mxu0
        %v1517 = vadd.f32 %v1340, %v1516
        %v1518 = vpop.f32.mrf.mxu0
        %v1519 = vadd.f32 %v1340, %v1518
        %v1520 = vpop.f32.mrf.mxu0
        %v1521 = vadd.f32 %v1345, %v1520
        %v1522 = vpop.f32.mrf.mxu0
        %v1523 = vadd.f32 %v1345, %v1522
        %1524 = vmatprep.mubr.bf16.mxu0 0
        %1525 = vmatmul.mubr.bf16.gmra.mxu0 %v1387
        %v1526 = vpop.f32.mrf.mxu0
        %v1527 = vadd.f32 %v1350, %v1526
        %v1528 = vpop.f32.mrf.mxu0
        %v1529 = vadd.f32 %v1350, %v1528
        %v1530 = vpop.f32.mrf.mxu0
        %v1531 = vadd.f32 %v1355, %v1530
        %v1532 = vpop.f32.mrf.mxu0
        %v1533 = vadd.f32 %v1355, %v1532
        %1534 = vdwg.mxu0
        %v1535 = vmax.f32 %v1424, 0.0
        %v1536 = vmax.f32 %v1426, 0.0
        %v1537 = vmax.f32 %v1497, 0.0
        %v1538 = vmax.f32 %v1499, 0.0
        %v1539 = vmax.f32 %v1428, 0.0
        %v1540 = vmax.f32 %v1430, 0.0
        %v1541 = vmax.f32 %v1501, 0.0
        %v1542 = vmax.f32 %v1503, 0.0
        %v1543 = vmax.f32 %v1434, 0.0
        %v1544 = vmax.f32 %v1436, 0.0
        %v1545 = vmax.f32 %v1507, 0.0
        %v1546 = vmax.f32 %v1509, 0.0
        %v1547 = vmax.f32 %v1438, 0.0
        %v1548 = vmax.f32 %v1440, 0.0
        %v1549 = vmax.f32 %v1511, 0.0
        %v1550 = vmax.f32 %v1513, 0.0
        %v1551 = vmax.f32 %v1444, 0.0
        %v1552 = vmax.f32 %v1446, 0.0
        %v1553 = vmax.f32 %v1517, 0.0
        %v1554 = vmax.f32 %v1519, 0.0
        %v1555 = vmax.f32 %v1448, 0.0
        %v1556 = vmax.f32 %v1450, 0.0
        %v1557 = vmax.f32 %v1521, 0.0
        %v1558 = vmax.f32 %v1523, 0.0
        %v1559 = vmax.f32 %v1454, 0.0
        %v1560 = vmax.f32 %v1456, 0.0
        %v1561 = vmax.f32 %v1527, 0.0
        %v1562 = vmax.f32 %v1529, 0.0
        %v1563 = vmax.f32 %v1458, 0.0
        %v1564 = vmax.f32 %v1460, 0.0
        %v1565 = vmax.f32 %v1531, 0.0
        %v1566 = vmax.f32 %v1533, 0.0
        %v1567 = vld [vmem:[%s9] sm:$0xff]
        %v1568 = vld [vmem:[%s9 + $0x8] sm:$0xff]
        %v1569 = vld [vmem:[%s9 + $0x10] sm:$0xff]
        %v1570 = vld [vmem:[%s9 + $0x18] sm:$0xff]
        %v1571 = vld [vmem:[%s9 + $0x20] sm:$0xff]
        %v1572 = vld [vmem:[%s9 + $0x28] sm:$0xff]
        %v1573 = vld [vmem:[%s9 + $0x30] sm:$0xff]
        %v1574 = vld [vmem:[%s9 + $0x38] sm:$0xff]
        %1576 = vset.pattern.permute.xlu0 0
        %1577 = vperm.xlu0 %1576, %v1567
        %v1578 = vpop.permute.xlu0 %1577
        %1581 = vset.pattern.permute.xlu0 0
        %1582 = vperm.xlu0 %1581, %v1568
        %v1583 = vpop.permute.xlu0 %1582
        %1586 = vset.pattern.permute.xlu0 0
        %1587 = vperm.xlu0 %1586, %v1569
        %v1588 = vpop.permute.xlu0 %1587
        %1591 = vset.pattern.permute.xlu0 0
        %1592 = vperm.xlu0 %1591, %v1570
        %v1593 = vpop.permute.xlu0 %1592
        %1596 = vset.pattern.permute.xlu0 0
        %1597 = vperm.xlu0 %1596, %v1571
        %v1598 = vpop.permute.xlu0 %1597
        %1601 = vset.pattern.permute.xlu0 0
        %1602 = vperm.xlu0 %1601, %v1572
        %v1603 = vpop.permute.xlu0 %1602
        %1606 = vset.pattern.permute.xlu0 0
        %1607 = vperm.xlu0 %1606, %v1573
        %v1608 = vpop.permute.xlu0 %1607
        %1611 = vset.pattern.permute.xlu0 0
        %1612 = vperm.xlu0 %1611, %v1574
        %v1613 = vpop.permute.xlu0 %1612
        %v1615 = vmul.f32 %v1578, %v1535
        %v1616 = vmul.f32 %v1578, %v1536
        %v1617 = vmul.f32 %v1578, %v1537
        %v1618 = vmul.f32 %v1578, %v1538
        %v1619 = vmul.f32 %v1583, %v1539
        %v1620 = vmul.f32 %v1583, %v1540
        %v1621 = vmul.f32 %v1583, %v1541
        %v1622 = vmul.f32 %v1583, %v1542
        %v1623 = vmul.f32 %v1588, %v1543
        %v1624 = vmul.f32 %v1588, %v1544
        %v1625 = vmul.f32 %v1588, %v1545
        %v1626 = vmul.f32 %v1588, %v1546
        %v1627 = vmul.f32 %v1593, %v1547
        %v1628 = vmul.f32 %v1593, %v1548
        %v1629 = vmul.f32 %v1593, %v1549
        %v1630 = vmul.f32 %v1593, %v1550
        %v1631 = vmul.f32 %v1598, %v1551
        %v1632 = vmul.f32 %v1598, %v1552
        %v1633 = vmul.f32 %v1598, %v1553
        %v1634 = vmul.f32 %v1598, %v1554
        %v1635 = vmul.f32 %v1603, %v1555
        %v1636 = vmul.f32 %v1603, %v1556
        %v1637 = vmul.f32 %v1603, %v1557
        %v1638 = vmul.f32 %v1603, %v1558
        %v1639 = vmul.f32 %v1608, %v1559
        %v1640 = vmul.f32 %v1608, %v1560
        %v1641 = vmul.f32 %v1608, %v1561
        %v1642 = vmul.f32 %v1608, %v1562
        %v1643 = vmul.f32 %v1613, %v1563
        %v1644 = vmul.f32 %v1613, %v1564
        %v1645 = vmul.f32 %v1613, %v1565
        %v1646 = vmul.f32 %v1613, %v1566
        %v1647 = vadd.f32 %v1615, %v1619
        %v1648 = vadd.f32 %v1647, %v1623
        %v1649 = vadd.f32 %v1648, %v1627
        %v1650 = vadd.f32 %v1649, %v1631
        %v1651 = vadd.f32 %v1650, %v1635
        %v1652 = vadd.f32 %v1651, %v1639
        %v1653 = vadd.f32 %v1652, %v1643
        %v1654 = vrot.slane %v1653, 4
        %v1655 = vadd.f32 %v1653, %v1654
        %v1656 = vrot.slane %v1655, 2
        %v1657 = vadd.f32 %v1655, %v1656
        %v1658 = vrot.slane %v1657, 1
        %v1659 = vadd.f32 %v1657, %v1658
        %v1660 = vadd.f32 %v1616, %v1620
        %v1661 = vadd.f32 %v1660, %v1624
        %v1662 = vadd.f32 %v1661, %v1628
        %v1663 = vadd.f32 %v1662, %v1632
        %v1664 = vadd.f32 %v1663, %v1636
        %v1665 = vadd.f32 %v1664, %v1640
        %v1666 = vadd.f32 %v1665, %v1644
        %v1667 = vrot.slane %v1666, 4
        %v1668 = vadd.f32 %v1666, %v1667
        %v1669 = vrot.slane %v1668, 2
        %v1670 = vadd.f32 %v1668, %v1669
        %v1671 = vrot.slane %v1670, 1
        %v1672 = vadd.f32 %v1670, %v1671
        %v1673 = vadd.f32 %v1617, %v1621
        %v1674 = vadd.f32 %v1673, %v1625
        %v1675 = vadd.f32 %v1674, %v1629
        %v1676 = vadd.f32 %v1675, %v1633
        %v1677 = vadd.f32 %v1676, %v1637
        %v1678 = vadd.f32 %v1677, %v1641
        %v1679 = vadd.f32 %v1678, %v1645
        %v1680 = vrot.slane %v1679, 4
        %v1681 = vadd.f32 %v1679, %v1680
        %v1682 = vrot.slane %v1681, 2
        %v1683 = vadd.f32 %v1681, %v1682
        %v1684 = vrot.slane %v1683, 1
        %v1685 = vadd.f32 %v1683, %v1684
        %v1686 = vadd.f32 %v1618, %v1622
        %v1687 = vadd.f32 %v1686, %v1626
        %v1688 = vadd.f32 %v1687, %v1630
        %v1689 = vadd.f32 %v1688, %v1634
        %v1690 = vadd.f32 %v1689, %v1638
        %v1691 = vadd.f32 %v1690, %v1642
        %v1692 = vadd.f32 %v1691, %v1646
        %v1693 = vrot.slane %v1692, 4
        %v1694 = vadd.f32 %v1692, %v1693
        %v1695 = vrot.slane %v1694, 2
        %v1696 = vadd.f32 %v1694, %v1695
        %v1697 = vrot.slane %v1696, 1
        %v1698 = vadd.f32 %v1696, %v1697
        %v1699 = vld [vmem:[#allocation2] sm:$0x1]
        %1701 = vset.pattern.permute.xlu0 0
        %1702 = vperm.xlu0 %1701, %v1699
        %v1703 = vpop.permute.xlu0 %1702
        %v1705 = vlaneseq
        %v1706 = vshrl.u32 %v1705, 7
        %v1707 = vsub.s32 0, %v1706
        %v1708 = vrot.slane %v1703, %v1707
        %v1709 = vadd.f32 %v1659, %v1708
        %v1710 = vadd.f32 %v1672, %v1708
        %v1711 = vadd.f32 %v1685, %v1708
        %v1712 = vadd.f32 %v1698, %v1708
        %v1717 = vcombine.low %v1709, %v1710
        %v1718 = vcombine.low %v1711, %v1712
        %v1720 = vunpack.c.l.s4 1966171168
        %v1721 = vunpack.c.0.s8 %v1720
        %v1722 = vlaneseq
        %v1723 = vshrl.u32 %v1722, 7
        %v1724 = vsub.s32 %v1721, %v1723
        %v1725 = vrot.slane %v1717, %v1724
        %v1727 = vunpack.c.l.s4 1966171168
        %v1728 = vunpack.c.0.s8 %v1727
        %v1729 = vlaneseq
        %v1730 = vshrl.u32 %v1729, 7
        %v1731 = vsub.s32 %v1728, %v1730
        %v1732 = vrot.slane %v1718, %v1731
        %v1733 = vcombine.low %v1725, %v1732
        %v1735 = vunpack.c.l.s4 1966171168
        %v1736 = vunpack.c.0.s8 %v1735
        %v1737 = vlaneseq
        %v1738 = vshrl.u32 %v1737, 7
        %v1739 = vsub.s32 %v1736, %v1738
        %v1740 = vrot.slane %v1733, %v1739
        %v1742 = vlaneseq
        %vm1743 = vcmp.ge.s32.totalorder %v1742, 0
        %vm1744 = vcmp.lt.s32.totalorder %v1742, 512
        %vm1745 = vmand %vm1743, %vm1744
        %1746 = vst.msk [vmem:[%s424] sm:$0xf] %vm1745, %v1740
        %s1747 = sand.u32 %s290, 1
        %s1748 = scalar_lea.sflag [#allocation5], %s1747
        %s1749 = sand.u32 %s290, 1
        %s1750 = smul.addr %s1749, 4
        %s1751 = scalar_lea.vmem [#allocation6], %s1750
        // Predicated region
        $region69: #{tpu_custom_call.1} parent=63 // pred_check
          %p1752 = pneg %p300
        $region70: #{tpu_custom_call.1} parent=63 // pred_check_branch
          %1754 = sbr.rel (%p1752) target = $region72
        $region71: #{tpu_custom_call.1} parent=63 // pred_region
          %s1755 = sadd.s32 %s34, %s35
          %s1756 = smul.u32 4, %s1755
          %s1758 = ssub.s32 64, 64
          %1759 = vsyncadd %s1748, %s1758
          %s1760 = smul.addr %s1756, 16
          %s1761 = scalar_lea.hbm %s11, %s1760
          %s1763 = sshll.u32 %s1751, 4
          %s1764 = int_to_ptr.vmem [resolvable:$true] %s1763
          %1766 = dma.vmem_to_hbm [thread:$0]  %s1764, 64, %s1761, %s1748
        $region72: #{tpu_custom_call.1} parent=63 // pred_fallthru
          _
      $region64: #{tpu_custom_call.1} parent=5 // pred_fallthru
        _
      %p1767 = scmp.le.s32.totalorder 2, %s25
      // Predicated region
      $region73: #{tpu_custom_call.1} parent=5 // pred_check
        %p1768 = pneg %p1767
      $region74: #{tpu_custom_call.1} parent=5 // pred_check_branch
        %1770 = sbr.rel (%p1768) target = $region76
      $region75: #{tpu_custom_call.1} parent=5 // pred_region
        %s1771 = ssub.s32 %s25, 2
        // Predicated region
        $region77: #{tpu_custom_call.1} parent=75 // pred_check
          %p1772 = pneg %p306
        $region78: #{tpu_custom_call.1} parent=75 // pred_check_branch
          %1774 = sbr.rel (%p1772) target = $region80
        $region79: #{tpu_custom_call.1} parent=75 // pred_region
          %s1775 = sand.u32 %s291, 1
          %s1776 = scalar_lea.sflag [#allocation5], %s1775
          %s1777 = sand.u32 %s291, 1
          %s1778 = smul.addr %s1777, 4
          %s1779 = scalar_lea.vmem [#allocation6], %s1778
          %1780 = dma.done %s1776, 64
        $region80: #{tpu_custom_call.1} parent=75 // pred_fallthru
          _
      $region76: #{tpu_custom_call.1} parent=5 // pred_fallthru
        _
    $region6: #{tpu_custom_call.1} parent=1 // loop_footer
      %s29 = sadd.s32 1, %s25
    $region7: #{tpu_custom_call.1} parent=1 // loop_footer_branch
      %24 = sbr.rel target = $region3
    $region8: #{tpu_custom_call.1} parent=1 // loop_exit
      _
    %1781 = vsyncpa [#allocation4], 1
    %s1782 = scalar_lea.sflag [#allocation4], 1
    %1783 = vsyncpa %s1782, 1
    %1784 = vsyncpa [#allocation5], 1
    %s1785 = scalar_lea.sflag [#allocation5], 1
    %1786 = vsyncpa %s1785, 1

</llo_original>
